<compile_context>
chip_gen: v7x
topology: tpu7x:2x2x1
jax: 0.10.0
libtpu: 0.0.40
codegen_flags: <defaults>
</compile_context>

<pallas_src>
import functools

import jax
import jax.numpy as jnp
from jax.experimental import pallas as pl
from jax.experimental.pallas import tpu as pltpu

LANE = 128          # TPU lane width (last-dim vreg width)
LN_EPS = 1e-5       # torch.nn.LayerNorm default eps
ITYPE_PAD = 8       # intervention one-hot zero-padded to sublane granularity


def _round_up(n, m):
    return ((n + m - 1) // m) * m


# ------------------------------ fused kernel ------------------------------- #

def _fused_causal_vae_kernel(*refs, n_enc, n_dec, causal_dim, conf_dim,
                             with_intervention, out_width):
    """Entire CausalVAE forward (eval mode) for one batch tile, all in VMEM."""
    it = iter(refs)
    x_ref = next(it)
    itype_ref = next(it) if with_intervention else None
    enc = [(next(it), next(it)) for _ in range(n_enc)]            # (w, [b;g;beta])
    heads_w, heads_b = next(it), next(it)                          # fused 4 heads
    dec_first = (next(it), next(it), next(it))                     # w_zc, w_zf, [b;g;beta]
    dec_rest = [(next(it), next(it)) for _ in range(n_dec - 1)]
    dec_out_w, dec_out_b = next(it), next(it)
    if with_intervention:
        ip1_wz, ip1_wt, ip1_b = next(it), next(it), next(it)
        ip2_w, ip2_b = next(it), next(it)
        ip3_w, ip3_b = next(it), next(it)
        is1_w, is1_b = next(it), next(it)
        is2_w, is2_b = next(it), next(it)
    o_ref = next(it)

    f32, bf16 = jnp.float32, jnp.bfloat16

    def mm(h, w_ref):
        # bf16 x bf16 MXU matmul, f32 accumulation.
        return jnp.dot(h.astype(bf16), w_ref[...], preferred_element_type=f32)

    def lin(h, w_ref, b_ref):
        return mm(h, w_ref) + b_ref[...]

    def ln_relu(h, g, bt):
        # one-pass LayerNorm statistics: var = E[x^2] - E[x]^2
        m = jnp.mean(h, axis=-1, keepdims=True)
        m2 = jnp.mean(h * h, axis=-1, keepdims=True)
        h = (h - m) * jax.lax.rsqrt(m2 - m * m + LN_EPS)
        return jnp.maximum(h * g + bt, 0.0)     # ReLU; Dropout(eval) == identity

    def mlp_layer(h, w_ref, pack_ref):
        p = pack_ref[...]                        # (3, N): bias / gamma / beta
        return ln_relu(mm(h, w_ref) + p[0:1, :], p[1:2, :], p[2:3, :])

    # ----- shared encoder + fused heads [cmu | clv | fmu | flv] -----
    h = x_ref[...]
    for (w, pk) in enc:
        h = mlp_layer(h, w, pk)
    hd = lin(h, heads_w, heads_b)                # (tb, 2*latent_dim)
    z_causal = hd[:, 0:causal_dim]               # = cmu  (eval: z = mu)
    z_conf = hd[:, 2 * causal_dim:2 * causal_dim + conf_dim]   # = fmu

    # ----- decoder (concat-free: first-layer weight pre-split along K) -----
    def decode(zc, zf):
        w_zc, w_zf, pk = dec_first
        p = pk[...]
        hh = ln_relu(mm(zc, w_zc) + mm(zf, w_zf) + p[0:1, :], p[1:2, :], p[2:3, :])
        for (w, pk2) in dec_rest:
            hh = mlp_layer(hh, w, pk2)
        return lin(hh, dec_out_w, dec_out_b)

    x_recon = decode(z_causal, z_conf)

    if with_intervention:
        # intervention module (concat-free: first-layer weight pre-split)
        itype = itype_ref[...]
        e = jnp.maximum(mm(z_causal, ip1_wz) + mm(itype, ip1_wt) + ip1_b[...], 0.0)
        e = jnp.maximum(lin(e, ip2_w, ip2_b), 0.0)
        e = lin(e, ip3_w, ip3_b)
        s = jnp.maximum(lin(itype, is1_w, is1_b), 0.0)
        s = jax.nn.sigmoid(lin(s, is2_w, is2_b))
        z_int = z_causal + s * e                 # z + strength * effect
        x_cf = decode(z_int, z_conf)
        parts = [x_recon, x_cf, hd, z_int]
    else:
        parts = [x_recon, hd]

    # ----- tightly packed output slab, one dense unmasked full-width store ----
    payload = sum(p.shape[-1] for p in parts)
    pad = out_width - payload
    if pad > 0:
        parts.append(jnp.zeros((x_recon.shape[0], pad), f32))
    o_ref[...] = jnp.concatenate(parts, axis=-1)


# ----------------------------- parameter setup ------------------------------ #

def _init_linear(key, in_dim, out_dim):
    kw, kb = jax.random.split(key)
    w = jax.random.normal(kw, (in_dim, out_dim), jnp.float32) / jnp.sqrt(
        jnp.float32(in_dim))
    b = jax.random.normal(kb, (1, out_dim), jnp.float32) * 0.01
    return w, b


def _init_ln(out_dim):
    return jnp.ones((1, out_dim), jnp.float32), jnp.zeros((1, out_dim), jnp.float32)


def init_causal_vae_params(key, config):
    """Torch-structured parameters (weights stored as (in, out))."""
    input_dim = config["input_dim"]
    latent_dim = config["latent_dim"]
    causal_dim = config["causal_dim"]
    conf_dim = latent_dim - causal_dim
    enc_hidden = config.get("encoder_hidden_dims", [512, 256])
    dec_hidden = config.get("decoder_hidden_dims", [256, 512])
    n_itypes = config.get("intervention_types", 3)

    keys = iter(jax.random.split(key, 64))
    params = {}

    enc = []
    prev = input_dim
    for hdim in enc_hidden:
        w, b = _init_linear(next(keys), prev, hdim)
        g, bt = _init_ln(hdim)
        enc.append((w, b, g, bt))
        prev = hdim
    params["enc"] = enc

    params["heads"] = {
        "cmu": _init_linear(next(keys), prev, causal_dim),
        "clv": _init_linear(next(keys), prev, causal_dim),
        "fmu": _init_linear(next(keys), prev, conf_dim),
        "flv": _init_linear(next(keys), prev, conf_dim),
    }

    dec = []
    prev = latent_dim
    for hdim in dec_hidden:
        w, b = _init_linear(next(keys), prev, hdim)
        g, bt = _init_ln(hdim)
        dec.append((w, b, g, bt))
        prev = hdim
    params["dec"] = dec
    params["dec_out"] = _init_linear(next(keys), prev, input_dim)

    params["ipred"] = [
        _init_linear(next(keys), causal_dim + n_itypes, 128),
        _init_linear(next(keys), 128, 64),
        _init_linear(next(keys), 64, causal_dim),
    ]
    params["istr"] = [
        _init_linear(next(keys), n_itypes, 32),
        _init_linear(next(keys), 32, causal_dim),
    ]

    params["dims"] = (input_dim, latent_dim, causal_dim, conf_dim, n_itypes)
    return params


def prepare_kernel_params(params):
    """Flatten / repack params into the fused kernel's argument order (ONCE).

    - matmul weights cast to bf16 (MXU single-pass; f32 accumulation in-kernel)
    - per-layer (bias, gamma, beta) stacked into one (3, N) f32 array
    - first decoder / intervention-predictor weights pre-split along K so the
      kernel needs no activation concatenation
    - the four head weights concatenated along N into one fused matmul
    """
    input_dim, latent_dim, causal_dim, conf_dim, n_itypes = params["dims"]
    assert n_itypes <= ITYPE_PAD
    bf16 = jnp.bfloat16

    def stack_ln(b, g, bt):
        return jnp.concatenate([b, g, bt], axis=0)          # (3, N) f32

    core = []
    for (w, b, g, bt) in params["enc"]:
        core += [w.astype(bf16), stack_ln(b, g, bt)]

    # fused heads, output order [cmu | clv | fmu | flv]
    hw = jnp.concatenate(
        [params["heads"][n][0] for n in ("cmu", "clv", "fmu", "flv")], axis=1)
    hb = jnp.concatenate(
        [params["heads"][n][1] for n in ("cmu", "clv", "fmu", "flv")], axis=1)
    core += [hw.astype(bf16), hb]

    # decoder first layer: split weight rows into causal / confounding halves
    (w0, b0, g0, bt0) = params["dec"][0]
    core += [w0[:causal_dim, :].astype(bf16), w0[causal_dim:, :].astype(bf16),
             stack_ln(b0, g0, bt0)]
    for (w, b, g, bt) in params["dec"][1:]:
        core += [w.astype(bf16), stack_ln(b, g, bt)]
    wo, bo = params["dec_out"]
    core += [wo.astype(bf16), bo]

    # intervention predictor L1: split + zero-pad intervention rows to ITYPE_PAD
    ivn = []
    pw1, pb1 = params["ipred"][0]
    ivn += [pw1[:causal_dim, :].astype(bf16),
            jnp.pad(pw1[causal_dim:, :],
                    ((0, ITYPE_PAD - n_itypes), (0, 0))).astype(bf16),
            pb1]
    for (w, b) in params["ipred"][1:]:
        ivn += [w.astype(bf16), b]
    sw1, sb1 = params["istr"][0]
    ivn += [jnp.pad(sw1, ((0, ITYPE_PAD - n_itypes), (0, 0))).astype(bf16), sb1]
    sw2, sb2 = params["istr"][1]
    ivn += [sw2.astype(bf16), sb2]

    static = dict(n_enc=len(params["enc"]), n_dec=len(params["dec"]),
                  input_dim=input_dim, causal_dim=causal_dim,
                  conf_dim=conf_dim, n_itypes=n_itypes)
    return {"core": tuple(core), "ivn": tuple(ivn), "static": static}


# ----------------------------- fused forward -------------------------------- #

def causal_vae_forward(kparams, x, intervention_type=None):
    st = kparams["static"]
    input_dim, causal_dim, conf_dim = st["input_dim"], st["causal_dim"], st["conf_dim"]
    latent_dim = causal_dim + conf_dim
    n_itypes = st["n_itypes"]
    B = x.shape[0]
    with_ivn = intervention_type is not None

    # tightly packed output layout (payload + single tail pad to 128 lanes)
    if with_ivn:
        widths = [input_dim, input_dim, 2 * latent_dim, causal_dim]
    else:
        widths = [input_dim, 2 * latent_dim]
    payload = sum(widths)
    out_width = _round_up(payload, LANE)

    # batch tile: >=2 grid steps for B>=16 (v7x 2 TCs), up to 256 rows for the
    # 256x256 MXU on v6e/v7x; tiny batches stay single-tile.
    if B >= 16:
        tb = min(256, _round_up(pl.cdiv(B, 2), 8))
    else:
        tb = B
    grid = (pl.cdiv(B, tb),)

    flat = kparams["core"] + (kparams["ivn"] if with_ivn else ())

    inputs = [x]
    in_specs = [pl.BlockSpec((tb, input_dim), lambda i: (i, 0))]
    if with_ivn:
        itype = jnp.pad(intervention_type.astype(jnp.float32),
                        ((0, 0), (0, ITYPE_PAD - n_itypes)))
        inputs.append(itype)
        in_specs.append(pl.BlockSpec((tb, ITYPE_PAD), lambda i: (i, 0)))
    inputs += list(flat)
    in_specs += [pl.BlockSpec(a.shape, lambda i: (0, 0)) for a in flat]

    kernel = functools.partial(
        _fused_causal_vae_kernel,
        n_enc=st["n_enc"], n_dec=st["n_dec"],
        causal_dim=causal_dim, conf_dim=conf_dim,
        with_intervention=with_ivn, out_width=out_width)

    out = pl.pallas_call(
        kernel,
        out_shape=jax.ShapeDtypeStruct((B, out_width), jnp.float32),
        grid=grid,
        in_specs=in_specs,
        out_specs=pl.BlockSpec((tb, out_width), lambda i: (i, 0)),
        compiler_params=pltpu.CompilerParams(
            dimension_semantics=("parallel",)),
    )(*inputs)

    # unpack the compact slab
    offs, acc = [], 0
    for w in widths:
        offs.append(acc)
        acc += w
    c, f = causal_dim, conf_dim
    if with_ivn:
        o_rec, o_cf, o_hd, o_zi = offs
    else:
        o_rec, o_hd = offs

    outputs = {
        "x_recon": out[:, o_rec:o_rec + input_dim],
        "z_causal_mu": out[:, o_hd:o_hd + c],
        "z_causal_logvar": out[:, o_hd + c:o_hd + 2 * c],
        "z_confounding_mu": out[:, o_hd + 2 * c:o_hd + 2 * c + f],
        "z_confounding_logvar": out[:, o_hd + 2 * c + f:o_hd + 2 * c + 2 * f],
    }
    outputs["z_causal"] = outputs["z_causal_mu"]           # eval-mode z = mu
    outputs["z_confounding"] = outputs["z_confounding_mu"]
    if with_ivn:
        outputs["z_causal_intervened"] = out[:, o_zi:o_zi + c]
        outputs["x_counterfactual"] = out[:, o_cf:o_cf + input_dim]
    return outputs


# ----------------------- pure-JAX reference (check) -------------------------- #

def causal_vae_reference(params, x, intervention_type):
    hp = jax.lax.Precision.HIGHEST

    def lin(h, w, b):
        return jnp.dot(h, w, precision=hp) + b

    def ln_relu(h, g, bt):
        m = h.mean(-1, keepdims=True)
        v = jnp.square(h - m).mean(-1, keepdims=True)
        return jnp.maximum(((h - m) / jnp.sqrt(v + LN_EPS)) * g + bt, 0.0)

    h = x
    for (w, b, g, bt) in params["enc"]:
        h = ln_relu(lin(h, w, b), g, bt)
    cmu = lin(h, *params["heads"]["cmu"])
    clv = lin(h, *params["heads"]["clv"])
    fmu = lin(h, *params["heads"]["fmu"])
    flv = lin(h, *params["heads"]["flv"])
    zc, zf = cmu, fmu

    def decode(zc_, zf_):
        hh = jnp.concatenate([zc_, zf_], axis=1)
        for (w, b, g, bt) in params["dec"]:
            hh = ln_relu(lin(hh, w, b), g, bt)
        return lin(hh, *params["dec_out"])

    x_recon = decode(zc, zf)
    (pw1, pb1), (pw2, pb2), (pw3, pb3) = params["ipred"]
    iin = jnp.concatenate([zc, intervention_type], axis=1)
    e = jnp.maximum(lin(iin, pw1, pb1), 0.0)
    e = jnp.maximum(lin(e, pw2, pb2), 0.0)
    e = lin(e, pw3, pb3)
    (sw1, sb1), (sw2, sb2) = params["istr"]
    s = jnp.maximum(lin(intervention_type, sw1, sb1), 0.0)
    s = jax.nn.sigmoid(lin(s, sw2, sb2))
    z_int = zc + s * e
    x_cf = decode(z_int, zf)
    return {"x_recon": x_recon, "x_counterfactual": x_cf,
            "z_causal_mu": cmu, "z_causal_logvar": clv,
            "z_confounding_mu": fmu, "z_confounding_logvar": flv,
            "z_causal_intervened": z_int}


# ----------------------------------- main ----------------------------------- #

if __name__ == "__main__":
    config = {
        "input_dim": 64,
        "latent_dim": 16,
        "causal_dim": 8,
        "encoder_hidden_dims": [128, 64],
        "decoder_hidden_dims": [64, 128],
        "intervention_types": 3,
    }

    key = jax.random.PRNGKey(0)
    kp, kx, ki = jax.random.split(key, 3)

    params = init_causal_vae_params(kp, config)
    kparams = prepare_kernel_params(params)

    batch = 8
    x = jax.random.normal(kx, (batch, config["input_dim"]), jnp.float32)
    itype = jax.nn.one_hot(
        jax.random.randint(ki, (batch,), 0, config["intervention_types"]),
        config["intervention_types"], dtype=jnp.float32)

    fwd = jax.jit(functools.partial(causal_vae_forward, kparams))

    # with intervention (full path incl. counterfactual decode)
    outputs = fwd(x, intervention_type=itype)
    jax.block_until_ready(outputs)
    # without intervention (lighter kernel variant, counterfactual path skipped)
    outputs_noi = fwd(x, intervention_type=None)
    jax.block_until_ready(outputs_noi)

    # shape checks
    conf_dim = config["latent_dim"] - config["causal_dim"]
    assert outputs["x_recon"].shape == (batch, config["input_dim"])
    assert outputs["x_counterfactual"].shape == (batch, config["input_dim"])
    assert outputs["z_causal"].shape == (batch, config["causal_dim"])
    assert outputs["z_confounding"].shape == (batch, conf_dim)
    assert outputs["z_causal_intervened"].shape == (batch, config["causal_dim"])
    assert outputs_noi["x_recon"].shape == (batch, config["input_dim"])
    assert "x_counterfactual" not in outputs_noi

    # numerical check vs. f32 HIGHEST-precision reference.
    # Tolerance accounts for bf16 matmul operands (f32 accumulation) in-kernel.
    ref = causal_vae_reference(params, x, itype)
    for name in ("x_recon", "x_counterfactual", "z_causal_mu",
                 "z_causal_logvar", "z_confounding_mu",
                 "z_confounding_logvar", "z_causal_intervened"):
        assert jnp.allclose(outputs[name], ref[name], rtol=5e-2, atol=5e-2), name
    for name in ("x_recon", "z_causal_mu", "z_causal_logvar",
                 "z_confounding_mu", "z_confounding_logvar"):
        assert jnp.allclose(outputs_noi[name], ref[name], rtol=5e-2, atol=5e-2), name

    print("KERNEL_OK")
</pallas_src>

<mosaic_0001>
module attributes {stable_mosaic.version = 11 : i64} {
  func.func @_fused_causal_vae_kernel(%arg0: i32, %arg1: memref<8x64xf32, #tpu.memory_space<vmem>>, %arg2: memref<8x8xf32, #tpu.memory_space<vmem>>, %arg3: memref<64x128xbf16, #tpu.memory_space<vmem>>, %arg4: memref<3x128xf32, #tpu.memory_space<vmem>>, %arg5: memref<128x64xbf16, #tpu.memory_space<vmem>>, %arg6: memref<3x64xf32, #tpu.memory_space<vmem>>, %arg7: memref<64x32xbf16, #tpu.memory_space<vmem>>, %arg8: memref<1x32xf32, #tpu.memory_space<vmem>>, %arg9: memref<8x64xbf16, #tpu.memory_space<vmem>>, %arg10: memref<8x64xbf16, #tpu.memory_space<vmem>>, %arg11: memref<3x64xf32, #tpu.memory_space<vmem>>, %arg12: memref<64x128xbf16, #tpu.memory_space<vmem>>, %arg13: memref<3x128xf32, #tpu.memory_space<vmem>>, %arg14: memref<128x64xbf16, #tpu.memory_space<vmem>>, %arg15: memref<1x64xf32, #tpu.memory_space<vmem>>, %arg16: memref<8x128xbf16, #tpu.memory_space<vmem>>, %arg17: memref<8x128xbf16, #tpu.memory_space<vmem>>, %arg18: memref<1x128xf32, #tpu.memory_space<vmem>>, %arg19: memref<128x64xbf16, #tpu.memory_space<vmem>>, %arg20: memref<1x64xf32, #tpu.memory_space<vmem>>, %arg21: memref<64x8xbf16, #tpu.memory_space<vmem>>, %arg22: memref<1x8xf32, #tpu.memory_space<vmem>>, %arg23: memref<8x32xbf16, #tpu.memory_space<vmem>>, %arg24: memref<1x32xf32, #tpu.memory_space<vmem>>, %arg25: memref<32x8xbf16, #tpu.memory_space<vmem>>, %arg26: memref<1x8xf32, #tpu.memory_space<vmem>>, %arg27: memref<8x256xf32, #tpu.memory_space<vmem>>) attributes {dimension_semantics = [#tpu.dimension_semantics<parallel>], iteration_bounds = array<i64: 1>, scalar_prefetch = 0 : i64, scratch_operands = 0 : i64, tpu.core_type = #tpu.core_type<tc>, window_params = [{transform_indices = @transform_0, window_bounds = array<i64: 8, 64>}, {transform_indices = @transform_1, window_bounds = array<i64: 8, 8>}, {pipeline_mode = #tpu.pipeline_mode<synchronous>, transform_indices = @transform_2, window_bounds = array<i64: 64, 128>}, {pipeline_mode = #tpu.pipeline_mode<synchronous>, transform_indices = @transform_3, window_bounds = array<i64: 3, 128>}, {pipeline_mode = #tpu.pipeline_mode<synchronous>, transform_indices = @transform_4, window_bounds = array<i64: 128, 64>}, {pipeline_mode = #tpu.pipeline_mode<synchronous>, transform_indices = @transform_5, window_bounds = array<i64: 3, 64>}, {pipeline_mode = #tpu.pipeline_mode<synchronous>, transform_indices = @transform_6, window_bounds = array<i64: 64, 32>}, {pipeline_mode = #tpu.pipeline_mode<synchronous>, transform_indices = @transform_7, window_bounds = array<i64: 1, 32>}, {pipeline_mode = #tpu.pipeline_mode<synchronous>, transform_indices = @transform_8, window_bounds = array<i64: 8, 64>}, {pipeline_mode = #tpu.pipeline_mode<synchronous>, transform_indices = @transform_9, window_bounds = array<i64: 8, 64>}, {pipeline_mode = #tpu.pipeline_mode<synchronous>, transform_indices = @transform_10, window_bounds = array<i64: 3, 64>}, {pipeline_mode = #tpu.pipeline_mode<synchronous>, transform_indices = @transform_11, window_bounds = array<i64: 64, 128>}, {pipeline_mode = #tpu.pipeline_mode<synchronous>, transform_indices = @transform_12, window_bounds = array<i64: 3, 128>}, {pipeline_mode = #tpu.pipeline_mode<synchronous>, transform_indices = @transform_13, window_bounds = array<i64: 128, 64>}, {pipeline_mode = #tpu.pipeline_mode<synchronous>, transform_indices = @transform_14, window_bounds = array<i64: 1, 64>}, {pipeline_mode = #tpu.pipeline_mode<synchronous>, transform_indices = @transform_15, window_bounds = array<i64: 8, 128>}, {pipeline_mode = #tpu.pipeline_mode<synchronous>, transform_indices = @transform_16, window_bounds = array<i64: 8, 128>}, {pipeline_mode = #tpu.pipeline_mode<synchronous>, transform_indices = @transform_17, window_bounds = array<i64: 1, 128>}, {pipeline_mode = #tpu.pipeline_mode<synchronous>, transform_indices = @transform_18, window_bounds = array<i64: 128, 64>}, {pipeline_mode = #tpu.pipeline_mode<synchronous>, transform_indices = @transform_19, window_bounds = array<i64: 1, 64>}, {pipeline_mode = #tpu.pipeline_mode<synchronous>, transform_indices = @transform_20, window_bounds = array<i64: 64, 8>}, {pipeline_mode = #tpu.pipeline_mode<synchronous>, transform_indices = @transform_21, window_bounds = array<i64: 1, 8>}, {pipeline_mode = #tpu.pipeline_mode<synchronous>, transform_indices = @transform_22, window_bounds = array<i64: 8, 32>}, {pipeline_mode = #tpu.pipeline_mode<synchronous>, transform_indices = @transform_23, window_bounds = array<i64: 1, 32>}, {pipeline_mode = #tpu.pipeline_mode<synchronous>, transform_indices = @transform_24, window_bounds = array<i64: 32, 8>}, {pipeline_mode = #tpu.pipeline_mode<synchronous>, transform_indices = @transform_25, window_bounds = array<i64: 1, 8>}, {transform_indices = @transform_26, window_bounds = array<i64: 8, 256>}]} {
    %c0 = arith.constant 0 : index
    %c0_0 = arith.constant 0 : index
    %0 = vector.load %arg1[%c0, %c0_0] : memref<8x64xf32, #tpu.memory_space<vmem>>, vector<8x64xf32>
    %c0_1 = arith.constant 0 : index
    %c0_2 = arith.constant 0 : index
    %1 = vector.load %arg4[%c0_1, %c0_2] : memref<3x128xf32, #tpu.memory_space<vmem>>, vector<3x128xf32>
    %2 = arith.truncf %0 : vector<8x64xf32> to vector<8x64xbf16>
    %c0_3 = arith.constant 0 : index
    %c0_4 = arith.constant 0 : index
    %3 = vector.load %arg3[%c0_3, %c0_4] : memref<64x128xbf16, #tpu.memory_space<vmem>>, vector<64x128xbf16>
    %cst = arith.constant dense<0.000000e+00> : vector<8x128xf32>
    %4 = tpu.matmul %2, %3, %cst {dimension_numbers = #tpu.dot_dimension_numbers<[1], [0], [0], [1], [0, 0, 1, 1], [], []>} : vector<8x64xbf16>, vector<64x128xbf16>, vector<8x128xf32> -> vector<8x128xf32>
    %5 = vector.extract_strided_slice %1 {offsets = [0, 0], sizes = [1, 128], strides = [1, 1]} : vector<3x128xf32> to vector<1x128xf32>
    %6 = vector.broadcast %5 : vector<1x128xf32> to vector<8x128xf32>
    %7 = arith.addf %4, %6 : vector<8x128xf32>
    %8 = vector.extract_strided_slice %1 {offsets = [1, 0], sizes = [1, 128], strides = [1, 1]} : vector<3x128xf32> to vector<1x128xf32>
    %9 = vector.extract_strided_slice %1 {offsets = [2, 0], sizes = [1, 128], strides = [1, 1]} : vector<3x128xf32> to vector<1x128xf32>
    %cst_5 = arith.constant dense<0.000000e+00> : vector<8xf32>
    %10 = vector.multi_reduction <add>, %7, %cst_5 [1] : vector<8x128xf32> to vector<8xf32>
    %11 = vector.shape_cast %10 : vector<8xf32> to vector<8x1xf32>
    %cst_6 = arith.constant 1.280000e+02 : f32
    %12 = vector.broadcast %cst_6 : f32 to vector<8x1xf32>
    %13 = arith.divf %11, %12 : vector<8x1xf32>
    %14 = arith.mulf %7, %7 : vector<8x128xf32>
    %cst_7 = arith.constant dense<0.000000e+00> : vector<8xf32>
    %15 = vector.multi_reduction <add>, %14, %cst_7 [1] : vector<8x128xf32> to vector<8xf32>
    %16 = vector.shape_cast %15 : vector<8xf32> to vector<8x1xf32>
    %cst_8 = arith.constant 1.280000e+02 : f32
    %17 = vector.broadcast %cst_8 : f32 to vector<8x1xf32>
    %18 = arith.divf %16, %17 : vector<8x1xf32>
    %19 = vector.broadcast %13 : vector<8x1xf32> to vector<8x128xf32>
    %20 = arith.subf %7, %19 : vector<8x128xf32>
    %21 = arith.mulf %13, %13 : vector<8x1xf32>
    %22 = arith.subf %18, %21 : vector<8x1xf32>
    %cst_9 = arith.constant 9.99999974E-6 : f32
    %23 = vector.broadcast %cst_9 : f32 to vector<8x1xf32>
    %24 = arith.addf %22, %23 : vector<8x1xf32>
    %25 = math.rsqrt %24 : vector<8x1xf32>
    %26 = vector.broadcast %25 : vector<8x1xf32> to vector<8x128xf32>
    %27 = arith.mulf %20, %26 : vector<8x128xf32>
    %28 = vector.broadcast %8 : vector<1x128xf32> to vector<8x128xf32>
    %29 = arith.mulf %27, %28 : vector<8x128xf32>
    %30 = vector.broadcast %9 : vector<1x128xf32> to vector<8x128xf32>
    %31 = arith.addf %29, %30 : vector<8x128xf32>
    %cst_10 = arith.constant 0.000000e+00 : f32
    %32 = vector.broadcast %cst_10 : f32 to vector<8x128xf32>
    %33 = arith.maximumf %31, %32 : vector<8x128xf32>
    %c0_11 = arith.constant 0 : index
    %c0_12 = arith.constant 0 : index
    %34 = vector.load %arg6[%c0_11, %c0_12] : memref<3x64xf32, #tpu.memory_space<vmem>>, vector<3x64xf32>
    %35 = arith.truncf %33 : vector<8x128xf32> to vector<8x128xbf16>
    %c0_13 = arith.constant 0 : index
    %c0_14 = arith.constant 0 : index
    %36 = vector.load %arg5[%c0_13, %c0_14] : memref<128x64xbf16, #tpu.memory_space<vmem>>, vector<128x64xbf16>
    %cst_15 = arith.constant dense<0.000000e+00> : vector<8x64xf32>
    %37 = tpu.matmul %35, %36, %cst_15 {dimension_numbers = #tpu.dot_dimension_numbers<[1], [0], [0], [1], [0, 0, 1, 1], [], []>} : vector<8x128xbf16>, vector<128x64xbf16>, vector<8x64xf32> -> vector<8x64xf32>
    %38 = vector.extract_strided_slice %34 {offsets = [0, 0], sizes = [1, 64], strides = [1, 1]} : vector<3x64xf32> to vector<1x64xf32>
    %39 = vector.broadcast %38 : vector<1x64xf32> to vector<8x64xf32>
    %40 = arith.addf %37, %39 : vector<8x64xf32>
    %41 = vector.extract_strided_slice %34 {offsets = [1, 0], sizes = [1, 64], strides = [1, 1]} : vector<3x64xf32> to vector<1x64xf32>
    %42 = vector.extract_strided_slice %34 {offsets = [2, 0], sizes = [1, 64], strides = [1, 1]} : vector<3x64xf32> to vector<1x64xf32>
    %cst_16 = arith.constant dense<0.000000e+00> : vector<8xf32>
    %43 = vector.multi_reduction <add>, %40, %cst_16 [1] : vector<8x64xf32> to vector<8xf32>
    %44 = vector.shape_cast %43 : vector<8xf32> to vector<8x1xf32>
    %cst_17 = arith.constant 6.400000e+01 : f32
    %45 = vector.broadcast %cst_17 : f32 to vector<8x1xf32>
    %46 = arith.divf %44, %45 : vector<8x1xf32>
    %47 = arith.mulf %40, %40 : vector<8x64xf32>
    %cst_18 = arith.constant dense<0.000000e+00> : vector<8xf32>
    %48 = vector.multi_reduction <add>, %47, %cst_18 [1] : vector<8x64xf32> to vector<8xf32>
    %49 = vector.shape_cast %48 : vector<8xf32> to vector<8x1xf32>
    %cst_19 = arith.constant 6.400000e+01 : f32
    %50 = vector.broadcast %cst_19 : f32 to vector<8x1xf32>
    %51 = arith.divf %49, %50 : vector<8x1xf32>
    %52 = vector.broadcast %46 : vector<8x1xf32> to vector<8x64xf32>
    %53 = arith.subf %40, %52 : vector<8x64xf32>
    %54 = arith.mulf %46, %46 : vector<8x1xf32>
    %55 = arith.subf %51, %54 : vector<8x1xf32>
    %cst_20 = arith.constant 9.99999974E-6 : f32
    %56 = vector.broadcast %cst_20 : f32 to vector<8x1xf32>
    %57 = arith.addf %55, %56 : vector<8x1xf32>
    %58 = math.rsqrt %57 : vector<8x1xf32>
    %59 = vector.broadcast %58 : vector<8x1xf32> to vector<8x64xf32>
    %60 = arith.mulf %53, %59 : vector<8x64xf32>
    %61 = vector.broadcast %41 : vector<1x64xf32> to vector<8x64xf32>
    %62 = arith.mulf %60, %61 : vector<8x64xf32>
    %63 = vector.broadcast %42 : vector<1x64xf32> to vector<8x64xf32>
    %64 = arith.addf %62, %63 : vector<8x64xf32>
    %cst_21 = arith.constant 0.000000e+00 : f32
    %65 = vector.broadcast %cst_21 : f32 to vector<8x64xf32>
    %66 = arith.maximumf %64, %65 : vector<8x64xf32>
    %67 = arith.truncf %66 : vector<8x64xf32> to vector<8x64xbf16>
    %c0_22 = arith.constant 0 : index
    %c0_23 = arith.constant 0 : index
    %68 = vector.load %arg7[%c0_22, %c0_23] : memref<64x32xbf16, #tpu.memory_space<vmem>>, vector<64x32xbf16>
    %cst_24 = arith.constant dense<0.000000e+00> : vector<8x32xf32>
    %69 = tpu.matmul %67, %68, %cst_24 {dimension_numbers = #tpu.dot_dimension_numbers<[1], [0], [0], [1], [0, 0, 1, 1], [], []>} : vector<8x64xbf16>, vector<64x32xbf16>, vector<8x32xf32> -> vector<8x32xf32>
    %c0_25 = arith.constant 0 : index
    %c0_26 = arith.constant 0 : index
    %70 = vector.load %arg8[%c0_25, %c0_26] : memref<1x32xf32, #tpu.memory_space<vmem>>, vector<1x32xf32>
    %71 = vector.broadcast %70 : vector<1x32xf32> to vector<8x32xf32>
    %72 = arith.addf %69, %71 : vector<8x32xf32>
    %73 = vector.extract_strided_slice %72 {offsets = [0, 0], sizes = [8, 8], strides = [1, 1]} : vector<8x32xf32> to vector<8x8xf32>
    %74 = vector.extract_strided_slice %72 {offsets = [0, 16], sizes = [8, 8], strides = [1, 1]} : vector<8x32xf32> to vector<8x8xf32>
    %c0_27 = arith.constant 0 : index
    %c0_28 = arith.constant 0 : index
    %75 = vector.load %arg11[%c0_27, %c0_28] : memref<3x64xf32, #tpu.memory_space<vmem>>, vector<3x64xf32>
    %76 = arith.truncf %73 : vector<8x8xf32> to vector<8x8xbf16>
    %c0_29 = arith.constant 0 : index
    %c0_30 = arith.constant 0 : index
    %77 = vector.load %arg9[%c0_29, %c0_30] : memref<8x64xbf16, #tpu.memory_space<vmem>>, vector<8x64xbf16>
    %cst_31 = arith.constant dense<0.000000e+00> : vector<8x64xf32>
    %78 = tpu.matmul %76, %77, %cst_31 {dimension_numbers = #tpu.dot_dimension_numbers<[1], [0], [0], [1], [0, 0, 1, 1], [], []>} : vector<8x8xbf16>, vector<8x64xbf16>, vector<8x64xf32> -> vector<8x64xf32>
    %79 = arith.truncf %74 : vector<8x8xf32> to vector<8x8xbf16>
    %c0_32 = arith.constant 0 : index
    %c0_33 = arith.constant 0 : index
    %80 = vector.load %arg10[%c0_32, %c0_33] : memref<8x64xbf16, #tpu.memory_space<vmem>>, vector<8x64xbf16>
    %cst_34 = arith.constant dense<0.000000e+00> : vector<8x64xf32>
    %81 = tpu.matmul %79, %80, %cst_34 {dimension_numbers = #tpu.dot_dimension_numbers<[1], [0], [0], [1], [0, 0, 1, 1], [], []>} : vector<8x8xbf16>, vector<8x64xbf16>, vector<8x64xf32> -> vector<8x64xf32>
    %82 = arith.addf %78, %81 : vector<8x64xf32>
    %83 = vector.extract_strided_slice %75 {offsets = [0, 0], sizes = [1, 64], strides = [1, 1]} : vector<3x64xf32> to vector<1x64xf32>
    %84 = vector.broadcast %83 : vector<1x64xf32> to vector<8x64xf32>
    %85 = arith.addf %82, %84 : vector<8x64xf32>
    %86 = vector.extract_strided_slice %75 {offsets = [1, 0], sizes = [1, 64], strides = [1, 1]} : vector<3x64xf32> to vector<1x64xf32>
    %87 = vector.extract_strided_slice %75 {offsets = [2, 0], sizes = [1, 64], strides = [1, 1]} : vector<3x64xf32> to vector<1x64xf32>
    %cst_35 = arith.constant dense<0.000000e+00> : vector<8xf32>
    %88 = vector.multi_reduction <add>, %85, %cst_35 [1] : vector<8x64xf32> to vector<8xf32>
    %89 = vector.shape_cast %88 : vector<8xf32> to vector<8x1xf32>
    %cst_36 = arith.constant 6.400000e+01 : f32
    %90 = vector.broadcast %cst_36 : f32 to vector<8x1xf32>
    %91 = arith.divf %89, %90 : vector<8x1xf32>
    %92 = arith.mulf %85, %85 : vector<8x64xf32>
    %cst_37 = arith.constant dense<0.000000e+00> : vector<8xf32>
    %93 = vector.multi_reduction <add>, %92, %cst_37 [1] : vector<8x64xf32> to vector<8xf32>
    %94 = vector.shape_cast %93 : vector<8xf32> to vector<8x1xf32>
    %cst_38 = arith.constant 6.400000e+01 : f32
    %95 = vector.broadcast %cst_38 : f32 to vector<8x1xf32>
    %96 = arith.divf %94, %95 : vector<8x1xf32>
    %97 = vector.broadcast %91 : vector<8x1xf32> to vector<8x64xf32>
    %98 = arith.subf %85, %97 : vector<8x64xf32>
    %99 = arith.mulf %91, %91 : vector<8x1xf32>
    %100 = arith.subf %96, %99 : vector<8x1xf32>
    %cst_39 = arith.constant 9.99999974E-6 : f32
    %101 = vector.broadcast %cst_39 : f32 to vector<8x1xf32>
    %102 = arith.addf %100, %101 : vector<8x1xf32>
    %103 = math.rsqrt %102 : vector<8x1xf32>
    %104 = vector.broadcast %103 : vector<8x1xf32> to vector<8x64xf32>
    %105 = arith.mulf %98, %104 : vector<8x64xf32>
    %106 = vector.broadcast %86 : vector<1x64xf32> to vector<8x64xf32>
    %107 = arith.mulf %105, %106 : vector<8x64xf32>
    %108 = vector.broadcast %87 : vector<1x64xf32> to vector<8x64xf32>
    %109 = arith.addf %107, %108 : vector<8x64xf32>
    %cst_40 = arith.constant 0.000000e+00 : f32
    %110 = vector.broadcast %cst_40 : f32 to vector<8x64xf32>
    %111 = arith.maximumf %109, %110 : vector<8x64xf32>
    %c0_41 = arith.constant 0 : index
    %c0_42 = arith.constant 0 : index
    %112 = vector.load %arg13[%c0_41, %c0_42] : memref<3x128xf32, #tpu.memory_space<vmem>>, vector<3x128xf32>
    %113 = arith.truncf %111 : vector<8x64xf32> to vector<8x64xbf16>
    %c0_43 = arith.constant 0 : index
    %c0_44 = arith.constant 0 : index
    %114 = vector.load %arg12[%c0_43, %c0_44] : memref<64x128xbf16, #tpu.memory_space<vmem>>, vector<64x128xbf16>
    %cst_45 = arith.constant dense<0.000000e+00> : vector<8x128xf32>
    %115 = tpu.matmul %113, %114, %cst_45 {dimension_numbers = #tpu.dot_dimension_numbers<[1], [0], [0], [1], [0, 0, 1, 1], [], []>} : vector<8x64xbf16>, vector<64x128xbf16>, vector<8x128xf32> -> vector<8x128xf32>
    %116 = vector.extract_strided_slice %112 {offsets = [0, 0], sizes = [1, 128], strides = [1, 1]} : vector<3x128xf32> to vector<1x128xf32>
    %117 = vector.broadcast %116 : vector<1x128xf32> to vector<8x128xf32>
    %118 = arith.addf %115, %117 : vector<8x128xf32>
    %119 = vector.extract_strided_slice %112 {offsets = [1, 0], sizes = [1, 128], strides = [1, 1]} : vector<3x128xf32> to vector<1x128xf32>
    %120 = vector.extract_strided_slice %112 {offsets = [2, 0], sizes = [1, 128], strides = [1, 1]} : vector<3x128xf32> to vector<1x128xf32>
    %cst_46 = arith.constant dense<0.000000e+00> : vector<8xf32>
    %121 = vector.multi_reduction <add>, %118, %cst_46 [1] : vector<8x128xf32> to vector<8xf32>
    %122 = vector.shape_cast %121 : vector<8xf32> to vector<8x1xf32>
    %cst_47 = arith.constant 1.280000e+02 : f32
    %123 = vector.broadcast %cst_47 : f32 to vector<8x1xf32>
    %124 = arith.divf %122, %123 : vector<8x1xf32>
    %125 = arith.mulf %118, %118 : vector<8x128xf32>
    %cst_48 = arith.constant dense<0.000000e+00> : vector<8xf32>
    %126 = vector.multi_reduction <add>, %125, %cst_48 [1] : vector<8x128xf32> to vector<8xf32>
    %127 = vector.shape_cast %126 : vector<8xf32> to vector<8x1xf32>
    %cst_49 = arith.constant 1.280000e+02 : f32
    %128 = vector.broadcast %cst_49 : f32 to vector<8x1xf32>
    %129 = arith.divf %127, %128 : vector<8x1xf32>
    %130 = vector.broadcast %124 : vector<8x1xf32> to vector<8x128xf32>
    %131 = arith.subf %118, %130 : vector<8x128xf32>
    %132 = arith.mulf %124, %124 : vector<8x1xf32>
    %133 = arith.subf %129, %132 : vector<8x1xf32>
    %cst_50 = arith.constant 9.99999974E-6 : f32
    %134 = vector.broadcast %cst_50 : f32 to vector<8x1xf32>
    %135 = arith.addf %133, %134 : vector<8x1xf32>
    %136 = math.rsqrt %135 : vector<8x1xf32>
    %137 = vector.broadcast %136 : vector<8x1xf32> to vector<8x128xf32>
    %138 = arith.mulf %131, %137 : vector<8x128xf32>
    %139 = vector.broadcast %119 : vector<1x128xf32> to vector<8x128xf32>
    %140 = arith.mulf %138, %139 : vector<8x128xf32>
    %141 = vector.broadcast %120 : vector<1x128xf32> to vector<8x128xf32>
    %142 = arith.addf %140, %141 : vector<8x128xf32>
    %cst_51 = arith.constant 0.000000e+00 : f32
    %143 = vector.broadcast %cst_51 : f32 to vector<8x128xf32>
    %144 = arith.maximumf %142, %143 : vector<8x128xf32>
    %145 = arith.truncf %144 : vector<8x128xf32> to vector<8x128xbf16>
    %c0_52 = arith.constant 0 : index
    %c0_53 = arith.constant 0 : index
    %146 = vector.load %arg14[%c0_52, %c0_53] : memref<128x64xbf16, #tpu.memory_space<vmem>>, vector<128x64xbf16>
    %cst_54 = arith.constant dense<0.000000e+00> : vector<8x64xf32>
    %147 = tpu.matmul %145, %146, %cst_54 {dimension_numbers = #tpu.dot_dimension_numbers<[1], [0], [0], [1], [0, 0, 1, 1], [], []>} : vector<8x128xbf16>, vector<128x64xbf16>, vector<8x64xf32> -> vector<8x64xf32>
    %c0_55 = arith.constant 0 : index
    %c0_56 = arith.constant 0 : index
    %148 = vector.load %arg15[%c0_55, %c0_56] : memref<1x64xf32, #tpu.memory_space<vmem>>, vector<1x64xf32>
    %149 = vector.broadcast %148 : vector<1x64xf32> to vector<8x64xf32>
    %150 = arith.addf %147, %149 : vector<8x64xf32>
    %c0_57 = arith.constant 0 : index
    %c0_58 = arith.constant 0 : index
    %151 = vector.load %arg2[%c0_57, %c0_58] : memref<8x8xf32, #tpu.memory_space<vmem>>, vector<8x8xf32>
    %152 = arith.truncf %73 : vector<8x8xf32> to vector<8x8xbf16>
    %c0_59 = arith.constant 0 : index
    %c0_60 = arith.constant 0 : index
    %153 = vector.load %arg16[%c0_59, %c0_60] : memref<8x128xbf16, #tpu.memory_space<vmem>>, vector<8x128xbf16>
    %cst_61 = arith.constant dense<0.000000e+00> : vector<8x128xf32>
    %154 = tpu.matmul %152, %153, %cst_61 {dimension_numbers = #tpu.dot_dimension_numbers<[1], [0], [0], [1], [0, 0, 1, 1], [], []>} : vector<8x8xbf16>, vector<8x128xbf16>, vector<8x128xf32> -> vector<8x128xf32>
    %155 = arith.truncf %151 : vector<8x8xf32> to vector<8x8xbf16>
    %c0_62 = arith.constant 0 : index
    %c0_63 = arith.constant 0 : index
    %156 = vector.load %arg17[%c0_62, %c0_63] : memref<8x128xbf16, #tpu.memory_space<vmem>>, vector<8x128xbf16>
    %cst_64 = arith.constant dense<0.000000e+00> : vector<8x128xf32>
    %157 = tpu.matmul %155, %156, %cst_64 {dimension_numbers = #tpu.dot_dimension_numbers<[1], [0], [0], [1], [0, 0, 1, 1], [], []>} : vector<8x8xbf16>, vector<8x128xbf16>, vector<8x128xf32> -> vector<8x128xf32>
    %158 = arith.addf %154, %157 : vector<8x128xf32>
    %c0_65 = arith.constant 0 : index
    %c0_66 = arith.constant 0 : index
    %159 = vector.load %arg18[%c0_65, %c0_66] : memref<1x128xf32, #tpu.memory_space<vmem>>, vector<1x128xf32>
    %160 = vector.broadcast %159 : vector<1x128xf32> to vector<8x128xf32>
    %161 = arith.addf %158, %160 : vector<8x128xf32>
    %cst_67 = arith.constant 0.000000e+00 : f32
    %162 = vector.broadcast %cst_67 : f32 to vector<8x128xf32>
    %163 = arith.maximumf %161, %162 : vector<8x128xf32>
    %164 = arith.truncf %163 : vector<8x128xf32> to vector<8x128xbf16>
    %c0_68 = arith.constant 0 : index
    %c0_69 = arith.constant 0 : index
    %165 = vector.load %arg19[%c0_68, %c0_69] : memref<128x64xbf16, #tpu.memory_space<vmem>>, vector<128x64xbf16>
    %cst_70 = arith.constant dense<0.000000e+00> : vector<8x64xf32>
    %166 = tpu.matmul %164, %165, %cst_70 {dimension_numbers = #tpu.dot_dimension_numbers<[1], [0], [0], [1], [0, 0, 1, 1], [], []>} : vector<8x128xbf16>, vector<128x64xbf16>, vector<8x64xf32> -> vector<8x64xf32>
    %c0_71 = arith.constant 0 : index
    %c0_72 = arith.constant 0 : index
    %167 = vector.load %arg20[%c0_71, %c0_72] : memref<1x64xf32, #tpu.memory_space<vmem>>, vector<1x64xf32>
    %168 = vector.broadcast %167 : vector<1x64xf32> to vector<8x64xf32>
    %169 = arith.addf %166, %168 : vector<8x64xf32>
    %cst_73 = arith.constant 0.000000e+00 : f32
    %170 = vector.broadcast %cst_73 : f32 to vector<8x64xf32>
    %171 = arith.maximumf %169, %170 : vector<8x64xf32>
    %172 = arith.truncf %171 : vector<8x64xf32> to vector<8x64xbf16>
    %c0_74 = arith.constant 0 : index
    %c0_75 = arith.constant 0 : index
    %173 = vector.load %arg21[%c0_74, %c0_75] : memref<64x8xbf16, #tpu.memory_space<vmem>>, vector<64x8xbf16>
    %cst_76 = arith.constant dense<0.000000e+00> : vector<8x8xf32>
    %174 = tpu.matmul %172, %173, %cst_76 {dimension_numbers = #tpu.dot_dimension_numbers<[1], [0], [0], [1], [0, 0, 1, 1], [], []>} : vector<8x64xbf16>, vector<64x8xbf16>, vector<8x8xf32> -> vector<8x8xf32>
    %c0_77 = arith.constant 0 : index
    %c0_78 = arith.constant 0 : index
    %175 = vector.load %arg22[%c0_77, %c0_78] : memref<1x8xf32, #tpu.memory_space<vmem>>, vector<1x8xf32>
    %176 = vector.broadcast %175 : vector<1x8xf32> to vector<8x8xf32>
    %177 = arith.addf %174, %176 : vector<8x8xf32>
    %178 = arith.truncf %151 : vector<8x8xf32> to vector<8x8xbf16>
    %c0_79 = arith.constant 0 : index
    %c0_80 = arith.constant 0 : index
    %179 = vector.load %arg23[%c0_79, %c0_80] : memref<8x32xbf16, #tpu.memory_space<vmem>>, vector<8x32xbf16>
    %cst_81 = arith.constant dense<0.000000e+00> : vector<8x32xf32>
    %180 = tpu.matmul %178, %179, %cst_81 {dimension_numbers = #tpu.dot_dimension_numbers<[1], [0], [0], [1], [0, 0, 1, 1], [], []>} : vector<8x8xbf16>, vector<8x32xbf16>, vector<8x32xf32> -> vector<8x32xf32>
    %c0_82 = arith.constant 0 : index
    %c0_83 = arith.constant 0 : index
    %181 = vector.load %arg24[%c0_82, %c0_83] : memref<1x32xf32, #tpu.memory_space<vmem>>, vector<1x32xf32>
    %182 = vector.broadcast %181 : vector<1x32xf32> to vector<8x32xf32>
    %183 = arith.addf %180, %182 : vector<8x32xf32>
    %cst_84 = arith.constant 0.000000e+00 : f32
    %184 = vector.broadcast %cst_84 : f32 to vector<8x32xf32>
    %185 = arith.maximumf %183, %184 : vector<8x32xf32>
    %186 = arith.truncf %185 : vector<8x32xf32> to vector<8x32xbf16>
    %c0_85 = arith.constant 0 : index
    %c0_86 = arith.constant 0 : index
    %187 = vector.load %arg25[%c0_85, %c0_86] : memref<32x8xbf16, #tpu.memory_space<vmem>>, vector<32x8xbf16>
    %cst_87 = arith.constant dense<0.000000e+00> : vector<8x8xf32>
    %188 = tpu.matmul %186, %187, %cst_87 {dimension_numbers = #tpu.dot_dimension_numbers<[1], [0], [0], [1], [0, 0, 1, 1], [], []>} : vector<8x32xbf16>, vector<32x8xbf16>, vector<8x8xf32> -> vector<8x8xf32>
    %c0_88 = arith.constant 0 : index
    %c0_89 = arith.constant 0 : index
    %189 = vector.load %arg26[%c0_88, %c0_89] : memref<1x8xf32, #tpu.memory_space<vmem>>, vector<1x8xf32>
    %190 = vector.broadcast %189 : vector<1x8xf32> to vector<8x8xf32>
    %191 = arith.addf %188, %190 : vector<8x8xf32>
    %192 = arith.negf %191 : vector<8x8xf32>
    %193 = math.exp %192 : vector<8x8xf32>
    %cst_90 = arith.constant 1.000000e+00 : f32
    %194 = vector.broadcast %cst_90 : f32 to vector<8x8xf32>
    %195 = arith.addf %194, %193 : vector<8x8xf32>
    %196 = arith.divf %194, %195 : vector<8x8xf32>
    %197 = arith.mulf %196, %177 : vector<8x8xf32>
    %198 = arith.addf %73, %197 : vector<8x8xf32>
    %c0_91 = arith.constant 0 : index
    %c0_92 = arith.constant 0 : index
    %199 = vector.load %arg11[%c0_91, %c0_92] : memref<3x64xf32, #tpu.memory_space<vmem>>, vector<3x64xf32>
    %200 = arith.truncf %198 : vector<8x8xf32> to vector<8x8xbf16>
    %c0_93 = arith.constant 0 : index
    %c0_94 = arith.constant 0 : index
    %201 = vector.load %arg9[%c0_93, %c0_94] : memref<8x64xbf16, #tpu.memory_space<vmem>>, vector<8x64xbf16>
    %cst_95 = arith.constant dense<0.000000e+00> : vector<8x64xf32>
    %202 = tpu.matmul %200, %201, %cst_95 {dimension_numbers = #tpu.dot_dimension_numbers<[1], [0], [0], [1], [0, 0, 1, 1], [], []>} : vector<8x8xbf16>, vector<8x64xbf16>, vector<8x64xf32> -> vector<8x64xf32>
    %203 = arith.truncf %74 : vector<8x8xf32> to vector<8x8xbf16>
    %c0_96 = arith.constant 0 : index
    %c0_97 = arith.constant 0 : index
    %204 = vector.load %arg10[%c0_96, %c0_97] : memref<8x64xbf16, #tpu.memory_space<vmem>>, vector<8x64xbf16>
    %cst_98 = arith.constant dense<0.000000e+00> : vector<8x64xf32>
    %205 = tpu.matmul %203, %204, %cst_98 {dimension_numbers = #tpu.dot_dimension_numbers<[1], [0], [0], [1], [0, 0, 1, 1], [], []>} : vector<8x8xbf16>, vector<8x64xbf16>, vector<8x64xf32> -> vector<8x64xf32>
    %206 = arith.addf %202, %205 : vector<8x64xf32>
    %207 = vector.extract_strided_slice %199 {offsets = [0, 0], sizes = [1, 64], strides = [1, 1]} : vector<3x64xf32> to vector<1x64xf32>
    %208 = vector.broadcast %207 : vector<1x64xf32> to vector<8x64xf32>
    %209 = arith.addf %206, %208 : vector<8x64xf32>
    %210 = vector.extract_strided_slice %199 {offsets = [1, 0], sizes = [1, 64], strides = [1, 1]} : vector<3x64xf32> to vector<1x64xf32>
    %211 = vector.extract_strided_slice %199 {offsets = [2, 0], sizes = [1, 64], strides = [1, 1]} : vector<3x64xf32> to vector<1x64xf32>
    %cst_99 = arith.constant dense<0.000000e+00> : vector<8xf32>
    %212 = vector.multi_reduction <add>, %209, %cst_99 [1] : vector<8x64xf32> to vector<8xf32>
    %213 = vector.shape_cast %212 : vector<8xf32> to vector<8x1xf32>
    %cst_100 = arith.constant 6.400000e+01 : f32
    %214 = vector.broadcast %cst_100 : f32 to vector<8x1xf32>
    %215 = arith.divf %213, %214 : vector<8x1xf32>
    %216 = arith.mulf %209, %209 : vector<8x64xf32>
    %cst_101 = arith.constant dense<0.000000e+00> : vector<8xf32>
    %217 = vector.multi_reduction <add>, %216, %cst_101 [1] : vector<8x64xf32> to vector<8xf32>
    %218 = vector.shape_cast %217 : vector<8xf32> to vector<8x1xf32>
    %cst_102 = arith.constant 6.400000e+01 : f32
    %219 = vector.broadcast %cst_102 : f32 to vector<8x1xf32>
    %220 = arith.divf %218, %219 : vector<8x1xf32>
    %221 = vector.broadcast %215 : vector<8x1xf32> to vector<8x64xf32>
    %222 = arith.subf %209, %221 : vector<8x64xf32>
    %223 = arith.mulf %215, %215 : vector<8x1xf32>
    %224 = arith.subf %220, %223 : vector<8x1xf32>
    %cst_103 = arith.constant 9.99999974E-6 : f32
    %225 = vector.broadcast %cst_103 : f32 to vector<8x1xf32>
    %226 = arith.addf %224, %225 : vector<8x1xf32>
    %227 = math.rsqrt %226 : vector<8x1xf32>
    %228 = vector.broadcast %227 : vector<8x1xf32> to vector<8x64xf32>
    %229 = arith.mulf %222, %228 : vector<8x64xf32>
    %230 = vector.broadcast %210 : vector<1x64xf32> to vector<8x64xf32>
    %231 = arith.mulf %229, %230 : vector<8x64xf32>
    %232 = vector.broadcast %211 : vector<1x64xf32> to vector<8x64xf32>
    %233 = arith.addf %231, %232 : vector<8x64xf32>
    %cst_104 = arith.constant 0.000000e+00 : f32
    %234 = vector.broadcast %cst_104 : f32 to vector<8x64xf32>
    %235 = arith.maximumf %233, %234 : vector<8x64xf32>
    %c0_105 = arith.constant 0 : index
    %c0_106 = arith.constant 0 : index
    %236 = vector.load %arg13[%c0_105, %c0_106] : memref<3x128xf32, #tpu.memory_space<vmem>>, vector<3x128xf32>
    %237 = arith.truncf %235 : vector<8x64xf32> to vector<8x64xbf16>
    %c0_107 = arith.constant 0 : index
    %c0_108 = arith.constant 0 : index
    %238 = vector.load %arg12[%c0_107, %c0_108] : memref<64x128xbf16, #tpu.memory_space<vmem>>, vector<64x128xbf16>
    %cst_109 = arith.constant dense<0.000000e+00> : vector<8x128xf32>
    %239 = tpu.matmul %237, %238, %cst_109 {dimension_numbers = #tpu.dot_dimension_numbers<[1], [0], [0], [1], [0, 0, 1, 1], [], []>} : vector<8x64xbf16>, vector<64x128xbf16>, vector<8x128xf32> -> vector<8x128xf32>
    %240 = vector.extract_strided_slice %236 {offsets = [0, 0], sizes = [1, 128], strides = [1, 1]} : vector<3x128xf32> to vector<1x128xf32>
    %241 = vector.broadcast %240 : vector<1x128xf32> to vector<8x128xf32>
    %242 = arith.addf %239, %241 : vector<8x128xf32>
    %243 = vector.extract_strided_slice %236 {offsets = [1, 0], sizes = [1, 128], strides = [1, 1]} : vector<3x128xf32> to vector<1x128xf32>
    %244 = vector.extract_strided_slice %236 {offsets = [2, 0], sizes = [1, 128], strides = [1, 1]} : vector<3x128xf32> to vector<1x128xf32>
    %cst_110 = arith.constant dense<0.000000e+00> : vector<8xf32>
    %245 = vector.multi_reduction <add>, %242, %cst_110 [1] : vector<8x128xf32> to vector<8xf32>
    %246 = vector.shape_cast %245 : vector<8xf32> to vector<8x1xf32>
    %cst_111 = arith.constant 1.280000e+02 : f32
    %247 = vector.broadcast %cst_111 : f32 to vector<8x1xf32>
    %248 = arith.divf %246, %247 : vector<8x1xf32>
    %249 = arith.mulf %242, %242 : vector<8x128xf32>
    %cst_112 = arith.constant dense<0.000000e+00> : vector<8xf32>
    %250 = vector.multi_reduction <add>, %249, %cst_112 [1] : vector<8x128xf32> to vector<8xf32>
    %251 = vector.shape_cast %250 : vector<8xf32> to vector<8x1xf32>
    %cst_113 = arith.constant 1.280000e+02 : f32
    %252 = vector.broadcast %cst_113 : f32 to vector<8x1xf32>
    %253 = arith.divf %251, %252 : vector<8x1xf32>
    %254 = vector.broadcast %248 : vector<8x1xf32> to vector<8x128xf32>
    %255 = arith.subf %242, %254 : vector<8x128xf32>
    %256 = arith.mulf %248, %248 : vector<8x1xf32>
    %257 = arith.subf %253, %256 : vector<8x1xf32>
    %cst_114 = arith.constant 9.99999974E-6 : f32
    %258 = vector.broadcast %cst_114 : f32 to vector<8x1xf32>
    %259 = arith.addf %257, %258 : vector<8x1xf32>
    %260 = math.rsqrt %259 : vector<8x1xf32>
    %261 = vector.broadcast %260 : vector<8x1xf32> to vector<8x128xf32>
    %262 = arith.mulf %255, %261 : vector<8x128xf32>
    %263 = vector.broadcast %243 : vector<1x128xf32> to vector<8x128xf32>
    %264 = arith.mulf %262, %263 : vector<8x128xf32>
    %265 = vector.broadcast %244 : vector<1x128xf32> to vector<8x128xf32>
    %266 = arith.addf %264, %265 : vector<8x128xf32>
    %cst_115 = arith.constant 0.000000e+00 : f32
    %267 = vector.broadcast %cst_115 : f32 to vector<8x128xf32>
    %268 = arith.maximumf %266, %267 : vector<8x128xf32>
    %269 = arith.truncf %268 : vector<8x128xf32> to vector<8x128xbf16>
    %c0_116 = arith.constant 0 : index
    %c0_117 = arith.constant 0 : index
    %270 = vector.load %arg14[%c0_116, %c0_117] : memref<128x64xbf16, #tpu.memory_space<vmem>>, vector<128x64xbf16>
    %cst_118 = arith.constant dense<0.000000e+00> : vector<8x64xf32>
    %271 = tpu.matmul %269, %270, %cst_118 {dimension_numbers = #tpu.dot_dimension_numbers<[1], [0], [0], [1], [0, 0, 1, 1], [], []>} : vector<8x128xbf16>, vector<128x64xbf16>, vector<8x64xf32> -> vector<8x64xf32>
    %c0_119 = arith.constant 0 : index
    %c0_120 = arith.constant 0 : index
    %272 = vector.load %arg15[%c0_119, %c0_120] : memref<1x64xf32, #tpu.memory_space<vmem>>, vector<1x64xf32>
    %273 = vector.broadcast %272 : vector<1x64xf32> to vector<8x64xf32>
    %274 = arith.addf %271, %273 : vector<8x64xf32>
    %cst_121 = arith.constant 0.000000e+00 : f32
    %275 = vector.broadcast %cst_121 : f32 to vector<8x88xf32>
    %276 = tpu.concatenate %150, %274, %72, %198, %275 in 1 : vector<8x64xf32>, vector<8x64xf32>, vector<8x32xf32>, vector<8x8xf32>, vector<8x88xf32> -> vector<8x256xf32>
    %c0_122 = arith.constant 0 : index
    %c0_123 = arith.constant 0 : index
    %277 = vector.load %arg27[%c0_122, %c0_123] : memref<8x256xf32, #tpu.memory_space<vmem>>, vector<8x256xf32>
    tpu.vector_store %arg27[%c0_122, %c0_123], %276 {strides = array<i32>} : memref<8x256xf32, #tpu.memory_space<vmem>>, vector<8x256xf32>,
    return
  }
  func.func @transform_0(%arg0: i32) -> (i32, i32) {
    %c0_i32 = arith.constant 0 : i32
    %c0_i32_0 = arith.constant 0 : i32
    return %arg0, %c0_i32 : i32, i32
  }
  func.func @transform_1(%arg0: i32) -> (i32, i32) {
    %c0_i32 = arith.constant 0 : i32
    %c0_i32_0 = arith.constant 0 : i32
    return %arg0, %c0_i32 : i32, i32
  }
  func.func @transform_2(%arg0: i32) -> (i32, i32) {
    %c0_i32 = arith.constant 0 : i32
    %c0_i32_0 = arith.constant 0 : i32
    %c0_i32_1 = arith.constant 0 : i32
    return %c0_i32, %c0_i32_0 : i32, i32
  }
  func.func @transform_3(%arg0: i32) -> (i32, i32) {
    %c0_i32 = arith.constant 0 : i32
    %c0_i32_0 = arith.constant 0 : i32
    %c0_i32_1 = arith.constant 0 : i32
    return %c0_i32, %c0_i32_0 : i32, i32
  }
  func.func @transform_4(%arg0: i32) -> (i32, i32) {
    %c0_i32 = arith.constant 0 : i32
    %c0_i32_0 = arith.constant 0 : i32
    %c0_i32_1 = arith.constant 0 : i32
    return %c0_i32, %c0_i32_0 : i32, i32
  }
  func.func @transform_5(%arg0: i32) -> (i32, i32) {
    %c0_i32 = arith.constant 0 : i32
    %c0_i32_0 = arith.constant 0 : i32
    %c0_i32_1 = arith.constant 0 : i32
    return %c0_i32, %c0_i32_0 : i32, i32
  }
  func.func @transform_6(%arg0: i32) -> (i32, i32) {
    %c0_i32 = arith.constant 0 : i32
    %c0_i32_0 = arith.constant 0 : i32
    %c0_i32_1 = arith.constant 0 : i32
    return %c0_i32, %c0_i32_0 : i32, i32
  }
  func.func @transform_7(%arg0: i32) -> (i32, i32) {
    %c0_i32 = arith.constant 0 : i32
    %c0_i32_0 = arith.constant 0 : i32
    %c0_i32_1 = arith.constant 0 : i32
    return %c0_i32, %c0_i32_0 : i32, i32
  }
  func.func @transform_8(%arg0: i32) -> (i32, i32) {
    %c0_i32 = arith.constant 0 : i32
    %c0_i32_0 = arith.constant 0 : i32
    %c0_i32_1 = arith.constant 0 : i32
    return %c0_i32, %c0_i32_0 : i32, i32
  }
  func.func @transform_9(%arg0: i32) -> (i32, i32) {
    %c0_i32 = arith.constant 0 : i32
    %c0_i32_0 = arith.constant 0 : i32
    %c0_i32_1 = arith.constant 0 : i32
    return %c0_i32, %c0_i32_0 : i32, i32
  }
  func.func @transform_10(%arg0: i32) -> (i32, i32) {
    %c0_i32 = arith.constant 0 : i32
    %c0_i32_0 = arith.constant 0 : i32
    %c0_i32_1 = arith.constant 0 : i32
    return %c0_i32, %c0_i32_0 : i32, i32
  }
  func.func @transform_11(%arg0: i32) -> (i32, i32) {
    %c0_i32 = arith.constant 0 : i32
    %c0_i32_0 = arith.constant 0 : i32
    %c0_i32_1 = arith.constant 0 : i32
    return %c0_i32, %c0_i32_0 : i32, i32
  }
  func.func @transform_12(%arg0: i32) -> (i32, i32) {
    %c0_i32 = arith.constant 0 : i32
    %c0_i32_0 = arith.constant 0 : i32
    %c0_i32_1 = arith.constant 0 : i32
    return %c0_i32, %c0_i32_0 : i32, i32
  }
  func.func @transform_13(%arg0: i32) -> (i32, i32) {
    %c0_i32 = arith.constant 0 : i32
    %c0_i32_0 = arith.constant 0 : i32
    %c0_i32_1 = arith.constant 0 : i32
    return %c0_i32, %c0_i32_0 : i32, i32
  }
  func.func @transform_14(%arg0: i32) -> (i32, i32) {
    %c0_i32 = arith.constant 0 : i32
    %c0_i32_0 = arith.constant 0 : i32
    %c0_i32_1 = arith.constant 0 : i32
    return %c0_i32, %c0_i32_0 : i32, i32
  }
  func.func @transform_15(%arg0: i32) -> (i32, i32) {
    %c0_i32 = arith.constant 0 : i32
    %c0_i32_0 = arith.constant 0 : i32
    %c0_i32_1 = arith.constant 0 : i32
    return %c0_i32, %c0_i32_0 : i32, i32
  }
  func.func @transform_16(%arg0: i32) -> (i32, i32) {
    %c0_i32 = arith.constant 0 : i32
    %c0_i32_0 = arith.constant 0 : i32
    %c0_i32_1 = arith.constant 0 : i32
    return %c0_i32, %c0_i32_0 : i32, i32
  }
  func.func @transform_17(%arg0: i32) -> (i32, i32) {
    %c0_i32 = arith.constant 0 : i32
    %c0_i32_0 = arith.constant 0 : i32
    %c0_i32_1 = arith.constant 0 : i32
    return %c0_i32, %c0_i32_0 : i32, i32
  }
  func.func @transform_18(%arg0: i32) -> (i32, i32) {
    %c0_i32 = arith.constant 0 : i32
    %c0_i32_0 = arith.constant 0 : i32
    %c0_i32_1 = arith.constant 0 : i32
    return %c0_i32, %c0_i32_0 : i32, i32
  }
  func.func @transform_19(%arg0: i32) -> (i32, i32) {
    %c0_i32 = arith.constant 0 : i32
    %c0_i32_0 = arith.constant 0 : i32
    %c0_i32_1 = arith.constant 0 : i32
    return %c0_i32, %c0_i32_0 : i32, i32
  }
  func.func @transform_20(%arg0: i32) -> (i32, i32) {
    %c0_i32 = arith.constant 0 : i32
    %c0_i32_0 = arith.constant 0 : i32
    %c0_i32_1 = arith.constant 0 : i32
    return %c0_i32, %c0_i32_0 : i32, i32
  }
  func.func @transform_21(%arg0: i32) -> (i32, i32) {
    %c0_i32 = arith.constant 0 : i32
    %c0_i32_0 = arith.constant 0 : i32
    %c0_i32_1 = arith.constant 0 : i32
    return %c0_i32, %c0_i32_0 : i32, i32
  }
  func.func @transform_22(%arg0: i32) -> (i32, i32) {
    %c0_i32 = arith.constant 0 : i32
    %c0_i32_0 = arith.constant 0 : i32
    %c0_i32_1 = arith.constant 0 : i32
    return %c0_i32, %c0_i32_0 : i32, i32
  }
  func.func @transform_23(%arg0: i32) -> (i32, i32) {
    %c0_i32 = arith.constant 0 : i32
    %c0_i32_0 = arith.constant 0 : i32
    %c0_i32_1 = arith.constant 0 : i32
    return %c0_i32, %c0_i32_0 : i32, i32
  }
  func.func @transform_24(%arg0: i32) -> (i32, i32) {
    %c0_i32 = arith.constant 0 : i32
    %c0_i32_0 = arith.constant 0 : i32
    %c0_i32_1 = arith.constant 0 : i32
    return %c0_i32, %c0_i32_0 : i32, i32
  }
  func.func @transform_25(%arg0: i32) -> (i32, i32) {
    %c0_i32 = arith.constant 0 : i32
    %c0_i32_0 = arith.constant 0 : i32
    %c0_i32_1 = arith.constant 0 : i32
    return %c0_i32, %c0_i32_0 : i32, i32
  }
  func.func @transform_26(%arg0: i32) -> (i32, i32) {
    %c0_i32 = arith.constant 0 : i32
    %c0_i32_0 = arith.constant 0 : i32
    return %arg0, %c0_i32 : i32, i32
  }
}

</mosaic_0001>

<llo_original>
// kernel: causal_vae_forward.1
$region0: #{causal_vae_forward.1}
  #allocation0 [shape = 'u32[]', space=smem, size = 0x4, offset = 0x4, fixed_abs, tag = 'smem constant byte address 0x4 - core index']
  #allocation1 [shape = 'u32[144,128]{1,0:T(1,128)}', space=vmem, size = 0x12000, scoped, tag = 'internal scratch']
  %s0 = inlined_call_operand.hbm [shape: f32[8,64], index: 0, kind: input, shape index: {}]
  %s1 = inlined_call_operand.vmem [shape: f32[8,8], index: 1, kind: input, shape index: {}]
  %s2 = inlined_call_operand.hbm [shape: bf16[64,128], index: 2, kind: input, shape index: {}]
  %s3 = inlined_call_operand.hbm [shape: f32[3,128], index: 3, kind: input, shape index: {}]
  %s4 = inlined_call_operand.hbm [shape: bf16[128,64], index: 4, kind: input, shape index: {}]
  %s5 = inlined_call_operand.hbm [shape: f32[3,64], index: 5, kind: input, shape index: {}]
  %s6 = inlined_call_operand.hbm [shape: bf16[64,32], index: 6, kind: input, shape index: {}]
  %s7 = inlined_call_operand.hbm [shape: f32[1,32], index: 7, kind: input, shape index: {}]
  %s8 = inlined_call_operand.hbm [shape: bf16[8,64], index: 8, kind: input, shape index: {}]
  %s9 = inlined_call_operand.hbm [shape: bf16[8,64], index: 9, kind: input, shape index: {}]
  %s10 = inlined_call_operand.hbm [shape: f32[3,64], index: 10, kind: input, shape index: {}]
  %s11 = inlined_call_operand.hbm [shape: bf16[64,128], index: 11, kind: input, shape index: {}]
  %s12 = inlined_call_operand.hbm [shape: f32[3,128], index: 12, kind: input, shape index: {}]
  %s13 = inlined_call_operand.vmem [shape: bf16[128,64], index: 13, kind: input, shape index: {}]
  %s14 = inlined_call_operand.hbm [shape: f32[1,64], index: 14, kind: input, shape index: {}]
  %s15 = inlined_call_operand.hbm [shape: bf16[8,128], index: 15, kind: input, shape index: {}]
  %s16 = inlined_call_operand.hbm [shape: bf16[8,128], index: 16, kind: input, shape index: {}]
  %s17 = inlined_call_operand.hbm [shape: f32[1,128], index: 17, kind: input, shape index: {}]
  %s18 = inlined_call_operand.vmem [shape: bf16[128,64], index: 18, kind: input, shape index: {}]
  %s19 = inlined_call_operand.hbm [shape: f32[1,64], index: 19, kind: input, shape index: {}]
  %s20 = inlined_call_operand.hbm [shape: bf16[64,8], index: 20, kind: input, shape index: {}]
  %s21 = inlined_call_operand.hbm [shape: f32[1,8], index: 21, kind: input, shape index: {}]
  %s22 = inlined_call_operand.hbm [shape: bf16[8,32], index: 22, kind: input, shape index: {}]
  %s23 = inlined_call_operand.vmem [shape: f32[1,32], index: 23, kind: input, shape index: {}]
  %s24 = inlined_call_operand.vmem [shape: bf16[32,8], index: 24, kind: input, shape index: {}]
  %s25 = inlined_call_operand.vmem [shape: f32[1,8], index: 25, kind: input, shape index: {}]
  %s26 = inlined_call_operand.vmem [shape: f32[8,256], index: 26, kind: output, shape index: {}]
  %s27 = sld [smem:[#allocation0]]
  $region194: #{causal_vae_forward.1} parent=0
    _
  %s29 = ssub.s32 1, %s27
  %s30 = scalar_select 0, %s29, %s27
  $region1: #{causal_vae_forward.1} parent=0
    #allocation2 [shape = 'u8[4096]{0}', space=vmem, size = 0x1000, scoped, tag = 'input window, operand 0, single buffered']
    #allocation3 [shape = 's32[1]{0}', space=sflag, size = 0x4, scoped, tag = 'scoped memory for causal_vae_forward.1']
    #allocation4 [shape = 'u8[16384]{0}', space=vmem, size = 0x4000, scoped, tag = 'input window, operand 2, single buffered']
    #allocation5 [shape = 's32[1]{0}', space=sflag, size = 0x4, scoped, tag = 'scoped memory for causal_vae_forward.1']
    #allocation6 [shape = 'u8[2048]{0}', space=vmem, size = 0x800, scoped, tag = 'input window, operand 3, single buffered']
    #allocation7 [shape = 'u8[32768]{0}', space=vmem, size = 0x8000, scoped, tag = 'input window, operand 4, single buffered']
    #allocation8 [shape = 's32[1]{0}', space=sflag, size = 0x4, scoped, tag = 'scoped memory for causal_vae_forward.1']
    #allocation9 [shape = 'u8[2048]{0}', space=vmem, size = 0x800, scoped, tag = 'input window, operand 5, single buffered']
    #allocation10 [shape = 'u8[16384]{0}', space=vmem, size = 0x4000, scoped, tag = 'input window, operand 6, single buffered']
    #allocation11 [shape = 's32[1]{0}', space=sflag, size = 0x4, scoped, tag = 'scoped memory for causal_vae_forward.1']
    #allocation12 [shape = 'u8[512]{0}', space=vmem, size = 0x400, scoped, tag = 'input window, operand 7, single buffered']
    #allocation13 [shape = 'u8[2048]{0}', space=vmem, size = 0x800, scoped, tag = 'input window, operand 8, single buffered']
    #allocation14 [shape = 's32[1]{0}', space=sflag, size = 0x4, scoped, tag = 'scoped memory for causal_vae_forward.1']
    #allocation15 [shape = 'u8[2048]{0}', space=vmem, size = 0x800, scoped, tag = 'input window, operand 9, single buffered']
    #allocation16 [shape = 'u8[2048]{0}', space=vmem, size = 0x800, scoped, tag = 'input window, operand 10, single buffered']
    #allocation17 [shape = 's32[1]{0}', space=sflag, size = 0x4, scoped, tag = 'scoped memory for causal_vae_forward.1']
    #allocation18 [shape = 'u8[16384]{0}', space=vmem, size = 0x4000, scoped, tag = 'input window, operand 11, single buffered']
    #allocation19 [shape = 'u8[2048]{0}', space=vmem, size = 0x800, scoped, tag = 'input window, operand 12, single buffered']
    #allocation20 [shape = 's32[1]{0}', space=sflag, size = 0x4, scoped, tag = 'scoped memory for causal_vae_forward.1']
    #allocation21 [shape = 'u8[512]{0}', space=vmem, size = 0x400, scoped, tag = 'input window, operand 14, single buffered']
    #allocation22 [shape = 'u8[2048]{0}', space=vmem, size = 0x800, scoped, tag = 'input window, operand 15, single buffered']
    #allocation23 [shape = 's32[1]{0}', space=sflag, size = 0x4, scoped, tag = 'scoped memory for causal_vae_forward.1']
    #allocation24 [shape = 'u8[2048]{0}', space=vmem, size = 0x800, scoped, tag = 'input window, operand 16, single buffered']
    #allocation25 [shape = 'u8[512]{0}', space=vmem, size = 0x400, scoped, tag = 'input window, operand 17, single buffered']
    #allocation26 [shape = 's32[1]{0}', space=sflag, size = 0x4, scoped, tag = 'scoped memory for causal_vae_forward.1']
    #allocation27 [shape = 'u8[512]{0}', space=vmem, size = 0x400, scoped, tag = 'input window, operand 19, single buffered']
    #allocation28 [shape = 'u8[16384]{0}', space=vmem, size = 0x4000, scoped, tag = 'input window, operand 20, single buffered']
    #allocation29 [shape = 's32[1]{0}', space=sflag, size = 0x4, scoped, tag = 'scoped memory for causal_vae_forward.1']
    #allocation30 [shape = 'u8[512]{0}', space=vmem, size = 0x400, scoped, tag = 'input window, operand 21, single buffered']
    #allocation31 [shape = 'u8[2048]{0}', space=vmem, size = 0x800, scoped, tag = 'input window, operand 22, single buffered']
    #allocation32 [shape = 's32[1]{0}', space=sflag, size = 0x4, scoped, tag = 'scoped memory for causal_vae_forward.1']
    %31 = vsyncpa [#allocation3], 0
    %32 = vsyncpa [#allocation5], 0
    %33 = vsyncpa [#allocation8], 0
    %34 = vsyncpa [#allocation11], 0
    %35 = vsyncpa [#allocation14], 0
    %36 = vsyncpa [#allocation17], 0
    %37 = vsyncpa [#allocation20], 0
    %38 = vsyncpa [#allocation23], 0
    %39 = vsyncpa [#allocation26], 0
    %40 = vsyncpa [#allocation29], 0
    %41 = vsyncpa [#allocation32], 0
    // Predicated region
    $region2: #{causal_vae_forward.1} parent=1 // pred_check
      _
    $region3: #{causal_vae_forward.1} parent=1 // pred_check_branch
      %43 = sbr.rel (0) target = $region5
    $region4: #{causal_vae_forward.1} parent=1 // pred_region
      %s45 = ssub.s32 128, 128
      %46 = vsyncadd [#allocation3], %s45
      %s48 = sshll.u32 [#allocation2], 4
      %s49 = int_to_ptr.vmem [resolvable:$true] %s48
      %51 = dma.hbm_to_vmem [thread:$0]  %s0, 128, %s49, [#allocation3]
    $region5: #{causal_vae_forward.1} parent=1 // pred_fallthru
      _
    // Predicated region
    $region6: #{causal_vae_forward.1} parent=1 // pred_check
      _
    $region7: #{causal_vae_forward.1} parent=1 // pred_check_branch
      %53 = sbr.rel (0) target = $region9
    $region8: #{causal_vae_forward.1} parent=1 // pred_region
      _
    $region9: #{causal_vae_forward.1} parent=1 // pred_fallthru
      _
    // Predicated region
    $region10: #{causal_vae_forward.1} parent=1 // pred_check
      _
    $region11: #{causal_vae_forward.1} parent=1 // pred_check_branch
      %55 = sbr.rel (0) target = $region13
    $region12: #{causal_vae_forward.1} parent=1 // pred_region
      %s57 = ssub.s32 512, 512
      %58 = vsyncadd [#allocation5], %s57
      %s59 = sshll.u32 [#allocation4], 4
      %s60 = int_to_ptr.vmem [resolvable:$true] %s59
      %65 = dma.hbm_to_vmem [thread:$0]  %s2, 512, %s60, [#allocation5], 64, 64, 4
    $region13: #{causal_vae_forward.1} parent=1 // pred_fallthru
      _
    // Predicated region
    $region14: #{causal_vae_forward.1} parent=1 // pred_check
      _
    $region15: #{causal_vae_forward.1} parent=1 // pred_check_branch
      %67 = sbr.rel (0) target = $region17
    $region16: #{causal_vae_forward.1} parent=1 // pred_region
      %s69 = ssub.s32 64, 64
      %70 = vsyncadd [#allocation5], %s69
      %s72 = sshll.u32 [#allocation6], 4
      %s73 = int_to_ptr.vmem [resolvable:$true] %s72
      %75 = dma.hbm_to_vmem [thread:$0]  %s3, 64, %s73, [#allocation5]
    $region17: #{causal_vae_forward.1} parent=1 // pred_fallthru
      _
    // Predicated region
    $region18: #{causal_vae_forward.1} parent=1 // pred_check
      _
    $region19: #{causal_vae_forward.1} parent=1 // pred_check_branch
      %77 = sbr.rel (0) target = $region21
    $region20: #{causal_vae_forward.1} parent=1 // pred_region
      %s79 = ssub.s32 1024, 1024
      %80 = vsyncadd [#allocation8], %s79
      %s81 = sshll.u32 [#allocation7], 4
      %s82 = int_to_ptr.vmem [resolvable:$true] %s81
      %87 = dma.hbm_to_vmem [thread:$0]  %s4, 1024, %s82, [#allocation8], 64, 64, 4
    $region21: #{causal_vae_forward.1} parent=1 // pred_fallthru
      _
    // Predicated region
    $region22: #{causal_vae_forward.1} parent=1 // pred_check
      _
    $region23: #{causal_vae_forward.1} parent=1 // pred_check_branch
      %89 = sbr.rel (0) target = $region25
    $region24: #{causal_vae_forward.1} parent=1 // pred_region
      %s91 = ssub.s32 64, 64
      %92 = vsyncadd [#allocation8], %s91
      %s94 = sshll.u32 [#allocation9], 4
      %s95 = int_to_ptr.vmem [resolvable:$true] %s94
      %97 = dma.hbm_to_vmem [thread:$0]  %s5, 64, %s95, [#allocation8]
    $region25: #{causal_vae_forward.1} parent=1 // pred_fallthru
      _
    // Predicated region
    $region26: #{causal_vae_forward.1} parent=1 // pred_check
      _
    $region27: #{causal_vae_forward.1} parent=1 // pred_check_branch
      %99 = sbr.rel (0) target = $region29
    $region28: #{causal_vae_forward.1} parent=1 // pred_region
      %s101 = ssub.s32 512, 512
      %102 = vsyncadd [#allocation11], %s101
      %s103 = sshll.u32 [#allocation10], 4
      %s104 = int_to_ptr.vmem [resolvable:$true] %s103
      %109 = dma.hbm_to_vmem [thread:$0]  %s6, 512, %s104, [#allocation11], 64, 64, 4
    $region29: #{causal_vae_forward.1} parent=1 // pred_fallthru
      _
    // Predicated region
    $region30: #{causal_vae_forward.1} parent=1 // pred_check
      _
    $region31: #{causal_vae_forward.1} parent=1 // pred_check_branch
      %111 = sbr.rel (0) target = $region33
    $region32: #{causal_vae_forward.1} parent=1 // pred_region
      %s113 = ssub.s32 16, 16
      %114 = vsyncadd [#allocation11], %s113
      %s116 = sshll.u32 [#allocation12], 4
      %s117 = int_to_ptr.vmem [resolvable:$true] %s116
      %119 = dma.hbm_to_vmem [thread:$0]  %s7, 16, %s117, [#allocation11]
    $region33: #{causal_vae_forward.1} parent=1 // pred_fallthru
      _
    // Predicated region
    $region34: #{causal_vae_forward.1} parent=1 // pred_check
      _
    $region35: #{causal_vae_forward.1} parent=1 // pred_check_branch
      %121 = sbr.rel (0) target = $region37
    $region36: #{causal_vae_forward.1} parent=1 // pred_region
      %s123 = ssub.s32 64, 64
      %124 = vsyncadd [#allocation14], %s123
      %s126 = sshll.u32 [#allocation13], 4
      %s127 = int_to_ptr.vmem [resolvable:$true] %s126
      %129 = dma.hbm_to_vmem [thread:$0]  %s8, 64, %s127, [#allocation14]
    $region37: #{causal_vae_forward.1} parent=1 // pred_fallthru
      _
    // Predicated region
    $region38: #{causal_vae_forward.1} parent=1 // pred_check
      _
    $region39: #{causal_vae_forward.1} parent=1 // pred_check_branch
      %131 = sbr.rel (0) target = $region41
    $region40: #{causal_vae_forward.1} parent=1 // pred_region
      %s133 = ssub.s32 64, 64
      %134 = vsyncadd [#allocation14], %s133
      %s136 = sshll.u32 [#allocation15], 4
      %s137 = int_to_ptr.vmem [resolvable:$true] %s136
      %139 = dma.hbm_to_vmem [thread:$0]  %s9, 64, %s137, [#allocation14]
    $region41: #{causal_vae_forward.1} parent=1 // pred_fallthru
      _
    // Predicated region
    $region42: #{causal_vae_forward.1} parent=1 // pred_check
      _
    $region43: #{causal_vae_forward.1} parent=1 // pred_check_branch
      %141 = sbr.rel (0) target = $region45
    $region44: #{causal_vae_forward.1} parent=1 // pred_region
      %s143 = ssub.s32 64, 64
      %144 = vsyncadd [#allocation17], %s143
      %s146 = sshll.u32 [#allocation16], 4
      %s147 = int_to_ptr.vmem [resolvable:$true] %s146
      %149 = dma.hbm_to_vmem [thread:$0]  %s10, 64, %s147, [#allocation17]
    $region45: #{causal_vae_forward.1} parent=1 // pred_fallthru
      _
    // Predicated region
    $region46: #{causal_vae_forward.1} parent=1 // pred_check
      _
    $region47: #{causal_vae_forward.1} parent=1 // pred_check_branch
      %151 = sbr.rel (0) target = $region49
    $region48: #{causal_vae_forward.1} parent=1 // pred_region
      %s153 = ssub.s32 512, 512
      %154 = vsyncadd [#allocation17], %s153
      %s155 = sshll.u32 [#allocation18], 4
      %s156 = int_to_ptr.vmem [resolvable:$true] %s155
      %161 = dma.hbm_to_vmem [thread:$0]  %s11, 512, %s156, [#allocation17], 64, 64, 4
    $region49: #{causal_vae_forward.1} parent=1 // pred_fallthru
      _
    // Predicated region
    $region50: #{causal_vae_forward.1} parent=1 // pred_check
      _
    $region51: #{causal_vae_forward.1} parent=1 // pred_check_branch
      %163 = sbr.rel (0) target = $region53
    $region52: #{causal_vae_forward.1} parent=1 // pred_region
      %s165 = ssub.s32 64, 64
      %166 = vsyncadd [#allocation20], %s165
      %s168 = sshll.u32 [#allocation19], 4
      %s169 = int_to_ptr.vmem [resolvable:$true] %s168
      %171 = dma.hbm_to_vmem [thread:$0]  %s12, 64, %s169, [#allocation20]
    $region53: #{causal_vae_forward.1} parent=1 // pred_fallthru
      _
    // Predicated region
    $region54: #{causal_vae_forward.1} parent=1 // pred_check
      _
    $region55: #{causal_vae_forward.1} parent=1 // pred_check_branch
      %173 = sbr.rel (0) target = $region57
    $region56: #{causal_vae_forward.1} parent=1 // pred_region
      _
    $region57: #{causal_vae_forward.1} parent=1 // pred_fallthru
      _
    // Predicated region
    $region58: #{causal_vae_forward.1} parent=1 // pred_check
      _
    $region59: #{causal_vae_forward.1} parent=1 // pred_check_branch
      %175 = sbr.rel (0) target = $region61
    $region60: #{causal_vae_forward.1} parent=1 // pred_region
      %s177 = ssub.s32 16, 16
      %178 = vsyncadd [#allocation20], %s177
      %s180 = sshll.u32 [#allocation21], 4
      %s181 = int_to_ptr.vmem [resolvable:$true] %s180
      %183 = dma.hbm_to_vmem [thread:$0]  %s14, 16, %s181, [#allocation20]
    $region61: #{causal_vae_forward.1} parent=1 // pred_fallthru
      _
    // Predicated region
    $region62: #{causal_vae_forward.1} parent=1 // pred_check
      _
    $region63: #{causal_vae_forward.1} parent=1 // pred_check_branch
      %185 = sbr.rel (0) target = $region65
    $region64: #{causal_vae_forward.1} parent=1 // pred_region
      %s187 = ssub.s32 64, 64
      %188 = vsyncadd [#allocation23], %s187
      %s190 = sshll.u32 [#allocation22], 4
      %s191 = int_to_ptr.vmem [resolvable:$true] %s190
      %193 = dma.hbm_to_vmem [thread:$0]  %s15, 64, %s191, [#allocation23]
    $region65: #{causal_vae_forward.1} parent=1 // pred_fallthru
      _
    // Predicated region
    $region66: #{causal_vae_forward.1} parent=1 // pred_check
      _
    $region67: #{causal_vae_forward.1} parent=1 // pred_check_branch
      %195 = sbr.rel (0) target = $region69
    $region68: #{causal_vae_forward.1} parent=1 // pred_region
      %s197 = ssub.s32 64, 64
      %198 = vsyncadd [#allocation23], %s197
      %s200 = sshll.u32 [#allocation24], 4
      %s201 = int_to_ptr.vmem [resolvable:$true] %s200
      %203 = dma.hbm_to_vmem [thread:$0]  %s16, 64, %s201, [#allocation23]
    $region69: #{causal_vae_forward.1} parent=1 // pred_fallthru
      _
    // Predicated region
    $region70: #{causal_vae_forward.1} parent=1 // pred_check
      _
    $region71: #{causal_vae_forward.1} parent=1 // pred_check_branch
      %205 = sbr.rel (0) target = $region73
    $region72: #{causal_vae_forward.1} parent=1 // pred_region
      %s207 = ssub.s32 16, 16
      %208 = vsyncadd [#allocation26], %s207
      %s210 = sshll.u32 [#allocation25], 4
      %s211 = int_to_ptr.vmem [resolvable:$true] %s210
      %213 = dma.hbm_to_vmem [thread:$0]  %s17, 16, %s211, [#allocation26]
    $region73: #{causal_vae_forward.1} parent=1 // pred_fallthru
      _
    // Predicated region
    $region74: #{causal_vae_forward.1} parent=1 // pred_check
      _
    $region75: #{causal_vae_forward.1} parent=1 // pred_check_branch
      %215 = sbr.rel (0) target = $region77
    $region76: #{causal_vae_forward.1} parent=1 // pred_region
      _
    $region77: #{causal_vae_forward.1} parent=1 // pred_fallthru
      _
    // Predicated region
    $region78: #{causal_vae_forward.1} parent=1 // pred_check
      _
    $region79: #{causal_vae_forward.1} parent=1 // pred_check_branch
      %217 = sbr.rel (0) target = $region81
    $region80: #{causal_vae_forward.1} parent=1 // pred_region
      %s219 = ssub.s32 16, 16
      %220 = vsyncadd [#allocation26], %s219
      %s222 = sshll.u32 [#allocation27], 4
      %s223 = int_to_ptr.vmem [resolvable:$true] %s222
      %225 = dma.hbm_to_vmem [thread:$0]  %s19, 16, %s223, [#allocation26]
    $region81: #{causal_vae_forward.1} parent=1 // pred_fallthru
      _
    // Predicated region
    $region82: #{causal_vae_forward.1} parent=1 // pred_check
      _
    $region83: #{causal_vae_forward.1} parent=1 // pred_check_branch
      %227 = sbr.rel (0) target = $region85
    $region84: #{causal_vae_forward.1} parent=1 // pred_region
      %s229 = ssub.s32 512, 512
      %230 = vsyncadd [#allocation29], %s229
      %s231 = sshll.u32 [#allocation28], 4
      %s232 = int_to_ptr.vmem [resolvable:$true] %s231
      %237 = dma.hbm_to_vmem [thread:$0]  %s20, 512, %s232, [#allocation29], 64, 64, 4
    $region85: #{causal_vae_forward.1} parent=1 // pred_fallthru
      _
    // Predicated region
    $region86: #{causal_vae_forward.1} parent=1 // pred_check
      _
    $region87: #{causal_vae_forward.1} parent=1 // pred_check_branch
      %239 = sbr.rel (0) target = $region89
    $region88: #{causal_vae_forward.1} parent=1 // pred_region
      %s241 = ssub.s32 16, 16
      %242 = vsyncadd [#allocation29], %s241
      %s244 = sshll.u32 [#allocation30], 4
      %s245 = int_to_ptr.vmem [resolvable:$true] %s244
      %247 = dma.hbm_to_vmem [thread:$0]  %s21, 16, %s245, [#allocation29]
    $region89: #{causal_vae_forward.1} parent=1 // pred_fallthru
      _
    // Predicated region
    $region90: #{causal_vae_forward.1} parent=1 // pred_check
      _
    $region91: #{causal_vae_forward.1} parent=1 // pred_check_branch
      %249 = sbr.rel (0) target = $region93
    $region92: #{causal_vae_forward.1} parent=1 // pred_region
      %s251 = ssub.s32 64, 64
      %252 = vsyncadd [#allocation32], %s251
      %s254 = sshll.u32 [#allocation31], 4
      %s255 = int_to_ptr.vmem [resolvable:$true] %s254
      %257 = dma.hbm_to_vmem [thread:$0]  %s22, 64, %s255, [#allocation32]
    $region93: #{causal_vae_forward.1} parent=1 // pred_fallthru
      _
    // Predicated region
    $region94: #{causal_vae_forward.1} parent=1 // pred_check
      _
    $region95: #{causal_vae_forward.1} parent=1 // pred_check_branch
      %259 = sbr.rel (0) target = $region97
    $region96: #{causal_vae_forward.1} parent=1 // pred_region
      _
    $region97: #{causal_vae_forward.1} parent=1 // pred_fallthru
      _
    // Predicated region
    $region98: #{causal_vae_forward.1} parent=1 // pred_check
      _
    $region99: #{causal_vae_forward.1} parent=1 // pred_check_branch
      %261 = sbr.rel (0) target = $region101
    $region100: #{causal_vae_forward.1} parent=1 // pred_region
      _
    $region101: #{causal_vae_forward.1} parent=1 // pred_fallthru
      _
    // Predicated region
    $region102: #{causal_vae_forward.1} parent=1 // pred_check
      _
    $region103: #{causal_vae_forward.1} parent=1 // pred_check_branch
      %263 = sbr.rel (0) target = $region105
    $region104: #{causal_vae_forward.1} parent=1 // pred_region
      _
    $region105: #{causal_vae_forward.1} parent=1 // pred_fallthru
      _
    // Predicated region
    $region106: #{causal_vae_forward.1} parent=1 // pred_check
      _
    $region107: #{causal_vae_forward.1} parent=1 // pred_check_branch
      %265 = sbr.rel (0) target = $region109
    $region108: #{causal_vae_forward.1} parent=1 // pred_region
      %266 = dma.done [#allocation3], 128
    $region109: #{causal_vae_forward.1} parent=1 // pred_fallthru
      _
    // Predicated region
    $region110: #{causal_vae_forward.1} parent=1 // pred_check
      _
    $region111: #{causal_vae_forward.1} parent=1 // pred_check_branch
      %268 = sbr.rel (0) target = $region113
    $region112: #{causal_vae_forward.1} parent=1 // pred_region
      %269 = dma.done [#allocation5], 512
    $region113: #{causal_vae_forward.1} parent=1 // pred_fallthru
      _
    // Predicated region
    $region114: #{causal_vae_forward.1} parent=1 // pred_check
      _
    $region115: #{causal_vae_forward.1} parent=1 // pred_check_branch
      %271 = sbr.rel (0) target = $region117
    $region116: #{causal_vae_forward.1} parent=1 // pred_region
      %272 = dma.done [#allocation5], 64
    $region117: #{causal_vae_forward.1} parent=1 // pred_fallthru
      _
    // Predicated region
    $region118: #{causal_vae_forward.1} parent=1 // pred_check
      _
    $region119: #{causal_vae_forward.1} parent=1 // pred_check_branch
      %274 = sbr.rel (0) target = $region121
    $region120: #{causal_vae_forward.1} parent=1 // pred_region
      %275 = dma.done [#allocation8], 1024
    $region121: #{causal_vae_forward.1} parent=1 // pred_fallthru
      _
    // Predicated region
    $region122: #{causal_vae_forward.1} parent=1 // pred_check
      _
    $region123: #{causal_vae_forward.1} parent=1 // pred_check_branch
      %277 = sbr.rel (0) target = $region125
    $region124: #{causal_vae_forward.1} parent=1 // pred_region
      %278 = dma.done [#allocation8], 64
    $region125: #{causal_vae_forward.1} parent=1 // pred_fallthru
      _
    // Predicated region
    $region126: #{causal_vae_forward.1} parent=1 // pred_check
      _
    $region127: #{causal_vae_forward.1} parent=1 // pred_check_branch
      %280 = sbr.rel (0) target = $region129
    $region128: #{causal_vae_forward.1} parent=1 // pred_region
      %281 = dma.done [#allocation11], 512
    $region129: #{causal_vae_forward.1} parent=1 // pred_fallthru
      _
    // Predicated region
    $region130: #{causal_vae_forward.1} parent=1 // pred_check
      _
    $region131: #{causal_vae_forward.1} parent=1 // pred_check_branch
      %283 = sbr.rel (0) target = $region133
    $region132: #{causal_vae_forward.1} parent=1 // pred_region
      %284 = dma.done [#allocation11], 16
    $region133: #{causal_vae_forward.1} parent=1 // pred_fallthru
      _
    // Predicated region
    $region134: #{causal_vae_forward.1} parent=1 // pred_check
      _
    $region135: #{causal_vae_forward.1} parent=1 // pred_check_branch
      %286 = sbr.rel (0) target = $region137
    $region136: #{causal_vae_forward.1} parent=1 // pred_region
      %287 = dma.done [#allocation14], 64
    $region137: #{causal_vae_forward.1} parent=1 // pred_fallthru
      _
    // Predicated region
    $region138: #{causal_vae_forward.1} parent=1 // pred_check
      _
    $region139: #{causal_vae_forward.1} parent=1 // pred_check_branch
      %289 = sbr.rel (0) target = $region141
    $region140: #{causal_vae_forward.1} parent=1 // pred_region
      %290 = dma.done [#allocation14], 64
    $region141: #{causal_vae_forward.1} parent=1 // pred_fallthru
      _
    // Predicated region
    $region142: #{causal_vae_forward.1} parent=1 // pred_check
      _
    $region143: #{causal_vae_forward.1} parent=1 // pred_check_branch
      %292 = sbr.rel (0) target = $region145
    $region144: #{causal_vae_forward.1} parent=1 // pred_region
      %293 = dma.done [#allocation17], 64
    $region145: #{causal_vae_forward.1} parent=1 // pred_fallthru
      _
    // Predicated region
    $region146: #{causal_vae_forward.1} parent=1 // pred_check
      _
    $region147: #{causal_vae_forward.1} parent=1 // pred_check_branch
      %295 = sbr.rel (0) target = $region149
    $region148: #{causal_vae_forward.1} parent=1 // pred_region
      %296 = dma.done [#allocation17], 512
    $region149: #{causal_vae_forward.1} parent=1 // pred_fallthru
      _
    // Predicated region
    $region150: #{causal_vae_forward.1} parent=1 // pred_check
      _
    $region151: #{causal_vae_forward.1} parent=1 // pred_check_branch
      %298 = sbr.rel (0) target = $region153
    $region152: #{causal_vae_forward.1} parent=1 // pred_region
      %299 = dma.done [#allocation20], 64
    $region153: #{causal_vae_forward.1} parent=1 // pred_fallthru
      _
    // Predicated region
    $region154: #{causal_vae_forward.1} parent=1 // pred_check
      _
    $region155: #{causal_vae_forward.1} parent=1 // pred_check_branch
      %301 = sbr.rel (0) target = $region157
    $region156: #{causal_vae_forward.1} parent=1 // pred_region
      %302 = dma.done [#allocation20], 16
    $region157: #{causal_vae_forward.1} parent=1 // pred_fallthru
      _
    // Predicated region
    $region158: #{causal_vae_forward.1} parent=1 // pred_check
      _
    $region159: #{causal_vae_forward.1} parent=1 // pred_check_branch
      %304 = sbr.rel (0) target = $region161
    $region160: #{causal_vae_forward.1} parent=1 // pred_region
      %305 = dma.done [#allocation23], 64
    $region161: #{causal_vae_forward.1} parent=1 // pred_fallthru
      _
    // Predicated region
    $region162: #{causal_vae_forward.1} parent=1 // pred_check
      _
    $region163: #{causal_vae_forward.1} parent=1 // pred_check_branch
      %307 = sbr.rel (0) target = $region165
    $region164: #{causal_vae_forward.1} parent=1 // pred_region
      %308 = dma.done [#allocation23], 64
    $region165: #{causal_vae_forward.1} parent=1 // pred_fallthru
      _
    // Predicated region
    $region166: #{causal_vae_forward.1} parent=1 // pred_check
      _
    $region167: #{causal_vae_forward.1} parent=1 // pred_check_branch
      %310 = sbr.rel (0) target = $region169
    $region168: #{causal_vae_forward.1} parent=1 // pred_region
      %311 = dma.done [#allocation26], 16
    $region169: #{causal_vae_forward.1} parent=1 // pred_fallthru
      _
    // Predicated region
    $region170: #{causal_vae_forward.1} parent=1 // pred_check
      _
    $region171: #{causal_vae_forward.1} parent=1 // pred_check_branch
      %313 = sbr.rel (0) target = $region173
    $region172: #{causal_vae_forward.1} parent=1 // pred_region
      %314 = dma.done [#allocation26], 16
    $region173: #{causal_vae_forward.1} parent=1 // pred_fallthru
      _
    // Predicated region
    $region174: #{causal_vae_forward.1} parent=1 // pred_check
      _
    $region175: #{causal_vae_forward.1} parent=1 // pred_check_branch
      %316 = sbr.rel (0) target = $region177
    $region176: #{causal_vae_forward.1} parent=1 // pred_region
      %317 = dma.done [#allocation29], 512
    $region177: #{causal_vae_forward.1} parent=1 // pred_fallthru
      _
    // Predicated region
    $region178: #{causal_vae_forward.1} parent=1 // pred_check
      _
    $region179: #{causal_vae_forward.1} parent=1 // pred_check_branch
      %319 = sbr.rel (0) target = $region181
    $region180: #{causal_vae_forward.1} parent=1 // pred_region
      %320 = dma.done [#allocation29], 16
    $region181: #{causal_vae_forward.1} parent=1 // pred_fallthru
      _
    // Predicated region
    $region182: #{causal_vae_forward.1} parent=1 // pred_check
      _
    $region183: #{causal_vae_forward.1} parent=1 // pred_check_branch
      %322 = sbr.rel (0) target = $region185
    $region184: #{causal_vae_forward.1} parent=1 // pred_region
      %323 = dma.done [#allocation32], 64
    $region185: #{causal_vae_forward.1} parent=1 // pred_fallthru
      _
    %v325 = vld [vmem:[#allocation2] sm:$0xff]
    %v326 = vld [vmem:[#allocation6] sm:$0x7]
    %v327 = vpack.c.bf16 %v325, %v325
    %v328 = vld [vmem:[#allocation4] sm:$0xf]
    %v329 = vld [vmem:[#allocation4 + $0x4] sm:$0xf]
    %v330 = vld [vmem:[#allocation4 + $0x8] sm:$0xf]
    %v331 = vld [vmem:[#allocation4 + $0xc] sm:$0xf]
    %v332 = vld [vmem:[#allocation4 + $0x10] sm:$0xf]
    %v333 = vld [vmem:[#allocation4 + $0x14] sm:$0xf]
    %v334 = vld [vmem:[#allocation4 + $0x18] sm:$0xf]
    %v335 = vld [vmem:[#allocation4 + $0x1c] sm:$0xf]
    %v336 = vlaneseq
    %v337 = vshrl.u32 %v336, 7
    %v338 = vsub.s32 0, %v337
    %v339 = vrot.slane %v326, %v338
    %v348 = vunpack.c.l.b16 %v328
    %v349 = vunpack.c.l.b16 %v329
    %v350 = vunpack.c.l.b16 %v330
    %v351 = vunpack.c.l.b16 %v331
    %v352 = vunpack.c.l.b16 %v332
    %v353 = vunpack.c.l.b16 %v333
    %v354 = vunpack.c.l.b16 %v334
    %v355 = vunpack.c.l.b16 %v335
    %v356 = vpack.c.b16 %v349, %v348
    %v357 = vpack.c.b16 %v351, %v350
    %v358 = vpack.c.b16 %v353, %v352
    %v359 = vpack.c.b16 %v355, %v354
    %vm364 = vcmask 523264
    %v366 = vsel %vm364, %v327, 0
    %368 = vmatprep.subr.bf16.mxu0 0
    %369 = vmatpush1.bf16.msra.mxu0 %v356
    %370 = vmatprep.subr.bf16.mxu0 0
    %371 = vmatpush1.bf16.msra.mxu0 %v357
    %372 = vmatprep.subr.bf16.mxu0 0
    %373 = vmatpush1.bf16.msra.mxu0 %v358
    %374 = vmatprep.subr.bf16.mxu0 0
    %375 = vmatpush1.bf16.msra.mxu0 %v359
    %376 = vmatprep.subr.bf16.mxu0 0
    %377 = vmatpush1.bf16.msra.mxu0 0
    %378 = vmatprep.subr.bf16.mxu0 0
    %379 = vmatpush1.bf16.msra.mxu0 0
    %380 = vmatprep.subr.bf16.mxu0 0
    %381 = vmatpush1.bf16.msra.mxu0 0
    %382 = vmatprep.subr.bf16.mxu0 0
    %383 = vmatpush1.bf16.msra.mxu0 0
    %384 = vmatprep.subr.bf16.mxu0 0
    %385 = vmatpush1.bf16.msra.mxu0 0
    %386 = vmatprep.subr.bf16.mxu0 0
    %387 = vmatpush1.bf16.msra.mxu0 0
    %388 = vmatprep.subr.bf16.mxu0 0
    %389 = vmatpush1.bf16.msra.mxu0 0
    %390 = vmatprep.subr.bf16.mxu0 0
    %391 = vmatpush1.bf16.msra.mxu0 0
    %392 = vmatprep.subr.bf16.mxu0 0
    %393 = vmatpush1.bf16.msra.mxu0 0
    %394 = vmatprep.subr.bf16.mxu0 0
    %395 = vmatpush1.bf16.msra.mxu0 0
    %396 = vmatprep.subr.bf16.mxu0 0
    %397 = vmatpush1.bf16.msra.mxu0 0
    %398 = vmatprep.subr.bf16.mxu0 0
    %399 = vmatpush1.bf16.msra.mxu0 0
    %400 = vmatprep.mubr.bf16.mxu0 0
    %401 = vmatmul.mubr.bf16.gmra.mrb[0].mxu0 %v366
    %v402 = vpop.f32.mrb[0].mxu0
    %v403 = vadd.f32 %v339, %v402
    %v404 = vpop.f32.mrb[0].mxu0
    %v405 = vpop.f32.mrb[0].mxu0
    %v406 = vpop.f32.mrb[0].mxu0
    %407 = vdwg.mxu0
    %408 = vadd.xlane.f32.xlu0 %v403
    %v409 = vpop.xlane.xlu0 %408
    %v410 = vrcp.pop 128.0
    %v411 = vmul.f32 %v409, %v410
    %v412 = vmul.f32 %v403, %v403
    %413 = vadd.xlane.f32.xlu0 %v412
    %v414 = vpop.xlane.xlu0 %413
    %v415 = vmul.f32 %v414, %v410
    %v416 = vsub.f32 %v403, %v411
    %v417 = vmul.f32 %v411, %v411
    %v418 = vsub.f32 %v415, %v417
    %v419 = vadd.f32 %v418, 1e-05
    %v420 = vrsqrt.pop %v419
    %v421 = vmul.f32 %v416, %v420
    %v422 = vlaneseq
    %v423 = vshrl.u32 %v422, 7
    %v424 = vsub.s32 1, %v423
    %v425 = vrot.slane %v326, %v424
    %v426 = vmul.f32 %v421, %v425
    %v427 = vlaneseq
    %v428 = vshrl.u32 %v427, 7
    %v429 = vsub.s32 2, %v428
    %v430 = vrot.slane %v326, %v429
    %v431 = vadd.f32 %v426, %v430
    %v432 = vmax.f32 %v431, 0.0
    %v433 = vld [vmem:[#allocation9] sm:$0x7]
    %v434 = vpack.c.bf16 %v432, %v432
    %v435 = vld [vmem:[#allocation7] sm:$0xf]
    %v436 = vld [vmem:[#allocation7 + $0x4] sm:$0xf]
    %v437 = vld [vmem:[#allocation7 + $0x8] sm:$0xf]
    %v438 = vld [vmem:[#allocation7 + $0xc] sm:$0xf]
    %v439 = vld [vmem:[#allocation7 + $0x10] sm:$0xf]
    %v440 = vld [vmem:[#allocation7 + $0x14] sm:$0xf]
    %v441 = vld [vmem:[#allocation7 + $0x18] sm:$0xf]
    %v442 = vld [vmem:[#allocation7 + $0x1c] sm:$0xf]
    %v443 = vld [vmem:[#allocation7 + $0x20] sm:$0xf]
    %v444 = vld [vmem:[#allocation7 + $0x24] sm:$0xf]
    %v445 = vld [vmem:[#allocation7 + $0x28] sm:$0xf]
    %v446 = vld [vmem:[#allocation7 + $0x2c] sm:$0xf]
    %v447 = vld [vmem:[#allocation7 + $0x30] sm:$0xf]
    %v448 = vld [vmem:[#allocation7 + $0x34] sm:$0xf]
    %v449 = vld [vmem:[#allocation7 + $0x38] sm:$0xf]
    %v450 = vld [vmem:[#allocation7 + $0x3c] sm:$0xf]
    %v451 = vlaneseq
    %v452 = vshrl.u32 %v451, 7
    %v453 = vsub.s32 0, %v452
    %v454 = vrot.slane %v433, %v453
    %v471 = vunpack.c.l.b16 %v435
    %v472 = vunpack.c.l.b16 %v436
    %v473 = vunpack.c.l.b16 %v437
    %v474 = vunpack.c.l.b16 %v438
    %v475 = vunpack.c.l.b16 %v439
    %v476 = vunpack.c.l.b16 %v440
    %v477 = vunpack.c.l.b16 %v441
    %v478 = vunpack.c.l.b16 %v442
    %v479 = vunpack.c.l.b16 %v443
    %v480 = vunpack.c.l.b16 %v444
    %v481 = vunpack.c.l.b16 %v445
    %v482 = vunpack.c.l.b16 %v446
    %v483 = vunpack.c.l.b16 %v447
    %v484 = vunpack.c.l.b16 %v448
    %v485 = vunpack.c.l.b16 %v449
    %v486 = vunpack.c.l.b16 %v450
    %v487 = vpack.c.b16 %v472, %v471
    %v488 = vpack.c.b16 %v474, %v473
    %v489 = vpack.c.b16 %v476, %v475
    %v490 = vpack.c.b16 %v478, %v477
    %v491 = vpack.c.b16 %v480, %v479
    %v492 = vpack.c.b16 %v482, %v481
    %v493 = vpack.c.b16 %v484, %v483
    %v494 = vpack.c.b16 %v486, %v485
    %503 = vmatprep.subr.bf16.mxu0 0
    %504 = vmatpush1.bf16.msra.mxu0 %v487
    %505 = vmatprep.subr.bf16.mxu0 0
    %506 = vmatpush1.bf16.msra.mxu0 %v488
    %507 = vmatprep.subr.bf16.mxu0 0
    %508 = vmatpush1.bf16.msra.mxu0 %v489
    %509 = vmatprep.subr.bf16.mxu0 0
    %510 = vmatpush1.bf16.msra.mxu0 %v490
    %511 = vmatprep.subr.bf16.mxu0 0
    %512 = vmatpush1.bf16.msra.mxu0 %v491
    %513 = vmatprep.subr.bf16.mxu0 0
    %514 = vmatpush1.bf16.msra.mxu0 %v492
    %515 = vmatprep.subr.bf16.mxu0 0
    %516 = vmatpush1.bf16.msra.mxu0 %v493
    %517 = vmatprep.subr.bf16.mxu0 0
    %518 = vmatpush1.bf16.msra.mxu0 %v494
    %519 = vmatprep.subr.bf16.mxu0 0
    %520 = vmatpush1.bf16.msra.mxu0 0
    %521 = vmatprep.subr.bf16.mxu0 0
    %522 = vmatpush1.bf16.msra.mxu0 0
    %523 = vmatprep.subr.bf16.mxu0 0
    %524 = vmatpush1.bf16.msra.mxu0 0
    %525 = vmatprep.subr.bf16.mxu0 0
    %526 = vmatpush1.bf16.msra.mxu0 0
    %527 = vmatprep.subr.bf16.mxu0 0
    %528 = vmatpush1.bf16.msra.mxu0 0
    %529 = vmatprep.subr.bf16.mxu0 0
    %530 = vmatpush1.bf16.msra.mxu0 0
    %531 = vmatprep.subr.bf16.mxu0 0
    %532 = vmatpush1.bf16.msra.mxu0 0
    %533 = vmatprep.subr.bf16.mxu0 0
    %534 = vmatpush1.bf16.msra.mxu0 0
    %535 = vmatprep.mubr.bf16.mxu0 0
    %536 = vmatmul.mubr.bf16.gmra.mrb[0].mxu0 %v434
    %v537 = vpop.f32.mrb[0].mxu0
    %v538 = vadd.f32 %v454, %v537
    %v539 = vpop.f32.mrb[0].mxu0
    %v540 = vpop.f32.mrb[0].mxu0
    %v541 = vpop.f32.mrb[0].mxu0
    %542 = vdwg.mxu0
    %v543 = vsel %vm364, %v538, 0.0
    %544 = vadd.xlane.f32.xlu0 %v543
    %v545 = vpop.xlane.xlu0 %544
    %v546 = vrcp.pop 64.0
    %v547 = vmul.f32 %v545, %v546
    %v548 = vmul.f32 %v538, %v538
    %v549 = vsel %vm364, %v548, 0.0
    %550 = vadd.xlane.f32.xlu0 %v549
    %v551 = vpop.xlane.xlu0 %550
    %v552 = vmul.f32 %v551, %v546
    %v553 = vsub.f32 %v538, %v547
    %v554 = vmul.f32 %v547, %v547
    %v555 = vsub.f32 %v552, %v554
    %v556 = vadd.f32 %v555, 1e-05
    %v557 = vrsqrt.pop %v556
    %v558 = vmul.f32 %v553, %v557
    %v559 = vlaneseq
    %v560 = vshrl.u32 %v559, 7
    %v561 = vsub.s32 1, %v560
    %v562 = vrot.slane %v433, %v561
    %v563 = vmul.f32 %v558, %v562
    %v564 = vlaneseq
    %v565 = vshrl.u32 %v564, 7
    %v566 = vsub.s32 2, %v565
    %v567 = vrot.slane %v433, %v566
    %v568 = vadd.f32 %v563, %v567
    %v569 = vmax.f32 %v568, 0.0
    %v570 = vpack.c.bf16 %v569, %v569
    %v571 = vld [vmem:[#allocation10] sm:$0xf]
    %v572 = vld [vmem:[#allocation10 + $0x4] sm:$0xf]
    %v573 = vld [vmem:[#allocation10 + $0x8] sm:$0xf]
    %v574 = vld [vmem:[#allocation10 + $0xc] sm:$0xf]
    %v575 = vld [vmem:[#allocation10 + $0x10] sm:$0xf]
    %v576 = vld [vmem:[#allocation10 + $0x14] sm:$0xf]
    %v577 = vld [vmem:[#allocation10 + $0x18] sm:$0xf]
    %v578 = vld [vmem:[#allocation10 + $0x1c] sm:$0xf]
    %v579 = vld [vmem:[#allocation12] sm:$0x1]
    %v581 = vlaneseq
    %v582 = vshrl.u32 %v581, 7
    %v583 = vsub.s32 0, %v582
    %v584 = vrot.slane %v579, %v583
    %v594 = vunpack.c.l.b16 %v571
    %v595 = vunpack.c.l.b16 %v572
    %v596 = vunpack.c.l.b16 %v573
    %v597 = vunpack.c.l.b16 %v574
    %v598 = vunpack.c.l.b16 %v575
    %v599 = vunpack.c.l.b16 %v576
    %v600 = vunpack.c.l.b16 %v577
    %v601 = vunpack.c.l.b16 %v578
    %v602 = vpack.c.b16 %v595, %v594
    %v603 = vpack.c.b16 %v597, %v596
    %v604 = vpack.c.b16 %v599, %v598
    %v605 = vpack.c.b16 %v601, %v600
    %v611 = vsel %vm364, %v570, 0
    %613 = vmatprep.subr.bf16.mxu0 0
    %614 = vmatpush1.bf16.msra.mxu0 %v602
    %615 = vmatprep.subr.bf16.mxu0 0
    %616 = vmatpush1.bf16.msra.mxu0 %v603
    %617 = vmatprep.subr.bf16.mxu0 0
    %618 = vmatpush1.bf16.msra.mxu0 %v604
    %619 = vmatprep.subr.bf16.mxu0 0
    %620 = vmatpush1.bf16.msra.mxu0 %v605
    %621 = vmatprep.subr.bf16.mxu0 0
    %622 = vmatpush1.bf16.msra.mxu0 0
    %623 = vmatprep.subr.bf16.mxu0 0
    %624 = vmatpush1.bf16.msra.mxu0 0
    %625 = vmatprep.subr.bf16.mxu0 0
    %626 = vmatpush1.bf16.msra.mxu0 0
    %627 = vmatprep.subr.bf16.mxu0 0
    %628 = vmatpush1.bf16.msra.mxu0 0
    %629 = vmatprep.subr.bf16.mxu0 0
    %630 = vmatpush1.bf16.msra.mxu0 0
    %631 = vmatprep.subr.bf16.mxu0 0
    %632 = vmatpush1.bf16.msra.mxu0 0
    %633 = vmatprep.subr.bf16.mxu0 0
    %634 = vmatpush1.bf16.msra.mxu0 0
    %635 = vmatprep.subr.bf16.mxu0 0
    %636 = vmatpush1.bf16.msra.mxu0 0
    %637 = vmatprep.subr.bf16.mxu0 0
    %638 = vmatpush1.bf16.msra.mxu0 0
    %639 = vmatprep.subr.bf16.mxu0 0
    %640 = vmatpush1.bf16.msra.mxu0 0
    %641 = vmatprep.subr.bf16.mxu0 0
    %642 = vmatpush1.bf16.msra.mxu0 0
    %643 = vmatprep.subr.bf16.mxu0 0
    %644 = vmatpush1.bf16.msra.mxu0 0
    %645 = vmatprep.mubr.bf16.mxu0 0
    %646 = vmatmul.mubr.bf16.gmra.mrb[0].mxu0 %v611
    %v647 = vpop.f32.mrb[0].mxu0
    %v648 = vadd.f32 %v584, %v647
    %v649 = vpop.f32.mrb[0].mxu0
    %v650 = vpop.f32.mrb[0].mxu0
    %v651 = vpop.f32.mrb[0].mxu0
    %652 = vdwg.mxu0
    %v653 = vld [vmem:[#allocation16] sm:$0x7]
    %v654 = vpack.c.bf16 %v648, %v648
    %v655 = vld [vmem:[#allocation13] sm:$0xf]
    %v656 = vld [vmem:[#allocation15] sm:$0xf]
    %658 = vrot.lane.b32.xlu0 %v654, 112
    %v659 = vpop.permute.xlu0 %658
    %vm660 = vcmask 64512
    %v662 = vsel %vm660, %v659, 0
    %vm664 = vcmask 1043456
    %v666 = vsel %vm664, %v656, 0
    %668 = vmatprep.subr.bf16.mxu0 0
    %669 = vmatpush1.bf16.msra.mxu0 %v666
    %670 = vmatprep.subr.bf16.mxu0 0
    %671 = vmatpush1.bf16.msra.mxu0 0
    %672 = vmatprep.subr.bf16.mxu0 0
    %673 = vmatpush1.bf16.msra.mxu0 0
    %674 = vmatprep.subr.bf16.mxu0 0
    %675 = vmatpush1.bf16.msra.mxu0 0
    %676 = vmatprep.subr.bf16.mxu0 0
    %677 = vmatpush1.bf16.msra.mxu0 0
    %678 = vmatprep.subr.bf16.mxu0 0
    %679 = vmatpush1.bf16.msra.mxu0 0
    %680 = vmatprep.subr.bf16.mxu0 0
    %681 = vmatpush1.bf16.msra.mxu0 0
    %682 = vmatprep.subr.bf16.mxu0 0
    %683 = vmatpush1.bf16.msra.mxu0 0
    %684 = vmatprep.subr.bf16.mxu0 0
    %685 = vmatpush1.bf16.msra.mxu0 0
    %686 = vmatprep.subr.bf16.mxu0 0
    %687 = vmatpush1.bf16.msra.mxu0 0
    %688 = vmatprep.subr.bf16.mxu0 0
    %689 = vmatpush1.bf16.msra.mxu0 0
    %690 = vmatprep.subr.bf16.mxu0 0
    %691 = vmatpush1.bf16.msra.mxu0 0
    %692 = vmatprep.subr.bf16.mxu0 0
    %693 = vmatpush1.bf16.msra.mxu0 0
    %694 = vmatprep.subr.bf16.mxu0 0
    %695 = vmatpush1.bf16.msra.mxu0 0
    %696 = vmatprep.subr.bf16.mxu0 0
    %697 = vmatpush1.bf16.msra.mxu0 0
    %698 = vmatprep.subr.bf16.mxu0 0
    %699 = vmatpush1.bf16.msra.mxu0 0
    %700 = vmatprep.mubr.bf16.mxu0 0
    %701 = vmatmul.mubr.bf16.gmra.mrb[0].mxu0 %v662
    %v702 = vpop.f32.mrb[0].mxu0
    %v703 = vadd.f32 0.0, %v702
    %v704 = vpop.f32.mrb[0].mxu0
    %v705 = vpop.f32.mrb[0].mxu0
    %v706 = vpop.f32.mrb[0].mxu0
    %707 = vdwg.mxu0
    %v709 = vsel %vm660, %v654, 0
    %v712 = vsel %vm664, %v655, 0
    %714 = vmatprep.subr.bf16.mxu0 0
    %715 = vmatpush1.bf16.msra.mxu0 %v712
    %716 = vmatprep.subr.bf16.mxu0 0
    %717 = vmatpush1.bf16.msra.mxu0 0
    %718 = vmatprep.subr.bf16.mxu0 0
    %719 = vmatpush1.bf16.msra.mxu0 0
    %720 = vmatprep.subr.bf16.mxu0 0
    %721 = vmatpush1.bf16.msra.mxu0 0
    %722 = vmatprep.subr.bf16.mxu0 0
    %723 = vmatpush1.bf16.msra.mxu0 0
    %724 = vmatprep.subr.bf16.mxu0 0
    %725 = vmatpush1.bf16.msra.mxu0 0
    %726 = vmatprep.subr.bf16.mxu0 0
    %727 = vmatpush1.bf16.msra.mxu0 0
    %728 = vmatprep.subr.bf16.mxu0 0
    %729 = vmatpush1.bf16.msra.mxu0 0
    %730 = vmatprep.subr.bf16.mxu0 0
    %731 = vmatpush1.bf16.msra.mxu0 0
    %732 = vmatprep.subr.bf16.mxu0 0
    %733 = vmatpush1.bf16.msra.mxu0 0
    %734 = vmatprep.subr.bf16.mxu0 0
    %735 = vmatpush1.bf16.msra.mxu0 0
    %736 = vmatprep.subr.bf16.mxu0 0
    %737 = vmatpush1.bf16.msra.mxu0 0
    %738 = vmatprep.subr.bf16.mxu0 0
    %739 = vmatpush1.bf16.msra.mxu0 0
    %740 = vmatprep.subr.bf16.mxu0 0
    %741 = vmatpush1.bf16.msra.mxu0 0
    %742 = vmatprep.subr.bf16.mxu0 0
    %743 = vmatpush1.bf16.msra.mxu0 0
    %744 = vmatprep.subr.bf16.mxu0 0
    %745 = vmatpush1.bf16.msra.mxu0 0
    %746 = vmatprep.mubr.bf16.mxu0 0
    %747 = vmatmul.mubr.bf16.gmra.mrb[0].mxu0 %v709
    %v748 = vpop.f32.mrb[0].mxu0
    %v749 = vadd.f32 %v703, %v748
    %v750 = vpop.f32.mrb[0].mxu0
    %v751 = vpop.f32.mrb[0].mxu0
    %v752 = vpop.f32.mrb[0].mxu0
    %753 = vdwg.mxu0
    %v754 = vlaneseq
    %v755 = vshrl.u32 %v754, 7
    %v756 = vsub.s32 0, %v755
    %v757 = vrot.slane %v653, %v756
    %v758 = vadd.f32 %v749, %v757
    %v759 = vsel %vm364, %v758, 0.0
    %760 = vadd.xlane.f32.xlu0 %v759
    %v761 = vpop.xlane.xlu0 %760
    %v762 = vmul.f32 %v761, %v546
    %v763 = vmul.f32 %v758, %v758
    %v764 = vsel %vm364, %v763, 0.0
    %765 = vadd.xlane.f32.xlu0 %v764
    %v766 = vpop.xlane.xlu0 %765
    %v767 = vmul.f32 %v766, %v546
    %v768 = vsub.f32 %v758, %v762
    %v769 = vmul.f32 %v762, %v762
    %v770 = vsub.f32 %v767, %v769
    %v771 = vadd.f32 %v770, 1e-05
    %v772 = vrsqrt.pop %v771
    %v773 = vmul.f32 %v768, %v772
    %v774 = vlaneseq
    %v775 = vshrl.u32 %v774, 7
    %v776 = vsub.s32 1, %v775
    %v777 = vrot.slane %v653, %v776
    %v778 = vmul.f32 %v773, %v777
    %v779 = vlaneseq
    %v780 = vshrl.u32 %v779, 7
    %v781 = vsub.s32 2, %v780
    %v782 = vrot.slane %v653, %v781
    %v783 = vadd.f32 %v778, %v782
    %v784 = vmax.f32 %v783, 0.0
    %v785 = vld [vmem:[#allocation19] sm:$0x7]
    %v786 = vpack.c.bf16 %v784, %v784
    %v787 = vld [vmem:[#allocation18] sm:$0xf]
    %v788 = vld [vmem:[#allocation18 + $0x4] sm:$0xf]
    %v789 = vld [vmem:[#allocation18 + $0x8] sm:$0xf]
    %v790 = vld [vmem:[#allocation18 + $0xc] sm:$0xf]
    %v791 = vld [vmem:[#allocation18 + $0x10] sm:$0xf]
    %v792 = vld [vmem:[#allocation18 + $0x14] sm:$0xf]
    %v793 = vld [vmem:[#allocation18 + $0x18] sm:$0xf]
    %v794 = vld [vmem:[#allocation18 + $0x1c] sm:$0xf]
    %v795 = vlaneseq
    %v796 = vshrl.u32 %v795, 7
    %v797 = vsub.s32 0, %v796
    %v798 = vrot.slane %v785, %v797
    %v807 = vunpack.c.l.b16 %v787
    %v808 = vunpack.c.l.b16 %v788
    %v809 = vunpack.c.l.b16 %v789
    %v810 = vunpack.c.l.b16 %v790
    %v811 = vunpack.c.l.b16 %v791
    %v812 = vunpack.c.l.b16 %v792
    %v813 = vunpack.c.l.b16 %v793
    %v814 = vunpack.c.l.b16 %v794
    %v815 = vpack.c.b16 %v808, %v807
    %v816 = vpack.c.b16 %v810, %v809
    %v817 = vpack.c.b16 %v812, %v811
    %v818 = vpack.c.b16 %v814, %v813
    %v824 = vsel %vm364, %v786, 0
    %826 = vmatprep.subr.bf16.mxu0 0
    %827 = vmatpush1.bf16.msra.mxu0 %v815
    %828 = vmatprep.subr.bf16.mxu0 0
    %829 = vmatpush1.bf16.msra.mxu0 %v816
    %830 = vmatprep.subr.bf16.mxu0 0
    %831 = vmatpush1.bf16.msra.mxu0 %v817
    %832 = vmatprep.subr.bf16.mxu0 0
    %833 = vmatpush1.bf16.msra.mxu0 %v818
    %834 = vmatprep.subr.bf16.mxu0 0
    %835 = vmatpush1.bf16.msra.mxu0 0
    %836 = vmatprep.subr.bf16.mxu0 0
    %837 = vmatpush1.bf16.msra.mxu0 0
    %838 = vmatprep.subr.bf16.mxu0 0
    %839 = vmatpush1.bf16.msra.mxu0 0
    %840 = vmatprep.subr.bf16.mxu0 0
    %841 = vmatpush1.bf16.msra.mxu0 0
    %842 = vmatprep.subr.bf16.mxu0 0
    %843 = vmatpush1.bf16.msra.mxu0 0
    %844 = vmatprep.subr.bf16.mxu0 0
    %845 = vmatpush1.bf16.msra.mxu0 0
    %846 = vmatprep.subr.bf16.mxu0 0
    %847 = vmatpush1.bf16.msra.mxu0 0
    %848 = vmatprep.subr.bf16.mxu0 0
    %849 = vmatpush1.bf16.msra.mxu0 0
    %850 = vmatprep.subr.bf16.mxu0 0
    %851 = vmatpush1.bf16.msra.mxu0 0
    %852 = vmatprep.subr.bf16.mxu0 0
    %853 = vmatpush1.bf16.msra.mxu0 0
    %854 = vmatprep.subr.bf16.mxu0 0
    %855 = vmatpush1.bf16.msra.mxu0 0
    %856 = vmatprep.subr.bf16.mxu0 0
    %857 = vmatpush1.bf16.msra.mxu0 0
    %858 = vmatprep.mubr.bf16.mxu0 0
    %859 = vmatmul.mubr.bf16.gmra.mrb[0].mxu0 %v824
    %v860 = vpop.f32.mrb[0].mxu0
    %v861 = vadd.f32 %v798, %v860
    %v862 = vpop.f32.mrb[0].mxu0
    %v863 = vpop.f32.mrb[0].mxu0
    %v864 = vpop.f32.mrb[0].mxu0
    %865 = vdwg.mxu0
    %866 = vadd.xlane.f32.xlu0 %v861
    %v867 = vpop.xlane.xlu0 %866
    %v868 = vmul.f32 %v867, %v410
    %v869 = vmul.f32 %v861, %v861
    %870 = vadd.xlane.f32.xlu0 %v869
    %v871 = vpop.xlane.xlu0 %870
    %v872 = vmul.f32 %v871, %v410
    %v873 = vsub.f32 %v861, %v868
    %v874 = vmul.f32 %v868, %v868
    %v875 = vsub.f32 %v872, %v874
    %v876 = vadd.f32 %v875, 1e-05
    %v877 = vrsqrt.pop %v876
    %v878 = vmul.f32 %v873, %v877
    %v879 = vlaneseq
    %v880 = vshrl.u32 %v879, 7
    %v881 = vsub.s32 1, %v880
    %v882 = vrot.slane %v785, %v881
    %v883 = vmul.f32 %v878, %v882
    %v884 = vlaneseq
    %v885 = vshrl.u32 %v884, 7
    %v886 = vsub.s32 2, %v885
    %v887 = vrot.slane %v785, %v886
    %v888 = vadd.f32 %v883, %v887
    %v889 = vmax.f32 %v888, 0.0
    %v890 = vpack.c.bf16 %v889, %v889
    %v891 = vld [vmem:[%s13] sm:$0xf]
    %v892 = vld [vmem:[%s13 + $0x4] sm:$0xf]
    %v893 = vld [vmem:[%s13 + $0x8] sm:$0xf]
    %v894 = vld [vmem:[%s13 + $0xc] sm:$0xf]
    %v895 = vld [vmem:[%s13 + $0x10] sm:$0xf]
    %v896 = vld [vmem:[%s13 + $0x14] sm:$0xf]
    %v897 = vld [vmem:[%s13 + $0x18] sm:$0xf]
    %v898 = vld [vmem:[%s13 + $0x1c] sm:$0xf]
    %v899 = vld [vmem:[%s13 + $0x20] sm:$0xf]
    %v900 = vld [vmem:[%s13 + $0x24] sm:$0xf]
    %v901 = vld [vmem:[%s13 + $0x28] sm:$0xf]
    %v902 = vld [vmem:[%s13 + $0x2c] sm:$0xf]
    %v903 = vld [vmem:[%s13 + $0x30] sm:$0xf]
    %v904 = vld [vmem:[%s13 + $0x34] sm:$0xf]
    %v905 = vld [vmem:[%s13 + $0x38] sm:$0xf]
    %v906 = vld [vmem:[%s13 + $0x3c] sm:$0xf]
    %v907 = vld [vmem:[#allocation21] sm:$0x1]
    %v909 = vlaneseq
    %v910 = vshrl.u32 %v909, 7
    %v911 = vsub.s32 0, %v910
    %v912 = vrot.slane %v907, %v911
    %v930 = vunpack.c.l.b16 %v891
    %v931 = vunpack.c.l.b16 %v892
    %v932 = vunpack.c.l.b16 %v893
    %v933 = vunpack.c.l.b16 %v894
    %v934 = vunpack.c.l.b16 %v895
    %v935 = vunpack.c.l.b16 %v896
    %v936 = vunpack.c.l.b16 %v897
    %v937 = vunpack.c.l.b16 %v898
    %v938 = vunpack.c.l.b16 %v899
    %v939 = vunpack.c.l.b16 %v900
    %v940 = vunpack.c.l.b16 %v901
    %v941 = vunpack.c.l.b16 %v902
    %v942 = vunpack.c.l.b16 %v903
    %v943 = vunpack.c.l.b16 %v904
    %v944 = vunpack.c.l.b16 %v905
    %v945 = vunpack.c.l.b16 %v906
    %v946 = vpack.c.b16 %v931, %v930
    %v947 = vpack.c.b16 %v933, %v932
    %v948 = vpack.c.b16 %v935, %v934
    %v949 = vpack.c.b16 %v937, %v936
    %v950 = vpack.c.b16 %v939, %v938
    %v951 = vpack.c.b16 %v941, %v940
    %v952 = vpack.c.b16 %v943, %v942
    %v953 = vpack.c.b16 %v945, %v944
    %962 = vmatprep.subr.bf16.mxu0 0
    %963 = vmatpush1.bf16.msra.mxu0 %v946
    %964 = vmatprep.subr.bf16.mxu0 0
    %965 = vmatpush1.bf16.msra.mxu0 %v947
    %966 = vmatprep.subr.bf16.mxu0 0
    %967 = vmatpush1.bf16.msra.mxu0 %v948
    %968 = vmatprep.subr.bf16.mxu0 0
    %969 = vmatpush1.bf16.msra.mxu0 %v949
    %970 = vmatprep.subr.bf16.mxu0 0
    %971 = vmatpush1.bf16.msra.mxu0 %v950
    %972 = vmatprep.subr.bf16.mxu0 0
    %973 = vmatpush1.bf16.msra.mxu0 %v951
    %974 = vmatprep.subr.bf16.mxu0 0
    %975 = vmatpush1.bf16.msra.mxu0 %v952
    %976 = vmatprep.subr.bf16.mxu0 0
    %977 = vmatpush1.bf16.msra.mxu0 %v953
    %978 = vmatprep.subr.bf16.mxu0 0
    %979 = vmatpush1.bf16.msra.mxu0 0
    %980 = vmatprep.subr.bf16.mxu0 0
    %981 = vmatpush1.bf16.msra.mxu0 0
    %982 = vmatprep.subr.bf16.mxu0 0
    %983 = vmatpush1.bf16.msra.mxu0 0
    %984 = vmatprep.subr.bf16.mxu0 0
    %985 = vmatpush1.bf16.msra.mxu0 0
    %986 = vmatprep.subr.bf16.mxu0 0
    %987 = vmatpush1.bf16.msra.mxu0 0
    %988 = vmatprep.subr.bf16.mxu0 0
    %989 = vmatpush1.bf16.msra.mxu0 0
    %990 = vmatprep.subr.bf16.mxu0 0
    %991 = vmatpush1.bf16.msra.mxu0 0
    %992 = vmatprep.subr.bf16.mxu0 0
    %993 = vmatpush1.bf16.msra.mxu0 0
    %994 = vmatprep.mubr.bf16.mxu0 0
    %995 = vmatmul.mubr.bf16.gmra.mrb[0].mxu0 %v890
    %v996 = vpop.f32.mrb[0].mxu0
    %v997 = vadd.f32 %v912, %v996
    %v998 = vpop.f32.mrb[0].mxu0
    %v999 = vpop.f32.mrb[0].mxu0
    %v1000 = vpop.f32.mrb[0].mxu0
    %1001 = vdwg.mxu0
    %v1002 = vld [vmem:[%s1] sm:$0xff]
    %v1003 = vld [vmem:[#allocation22] sm:$0xf]
    %v1004 = vpack.c.bf16 %v1002, %v1002
    %v1005 = vld [vmem:[#allocation24] sm:$0xf]
    %v1007 = vsel %vm660, %v1004, 0
    %v1010 = vsel %vm664, %v1005, 0
    %1012 = vmatprep.subr.bf16.mxu0 0
    %1013 = vmatpush1.bf16.msra.mxu0 %v1010
    %1014 = vmatprep.subr.bf16.mxu0 0
    %1015 = vmatpush1.bf16.msra.mxu0 0
    %1016 = vmatprep.subr.bf16.mxu0 0
    %1017 = vmatpush1.bf16.msra.mxu0 0
    %1018 = vmatprep.subr.bf16.mxu0 0
    %1019 = vmatpush1.bf16.msra.mxu0 0
    %1020 = vmatprep.subr.bf16.mxu0 0
    %1021 = vmatpush1.bf16.msra.mxu0 0
    %1022 = vmatprep.subr.bf16.mxu0 0
    %1023 = vmatpush1.bf16.msra.mxu0 0
    %1024 = vmatprep.subr.bf16.mxu0 0
    %1025 = vmatpush1.bf16.msra.mxu0 0
    %1026 = vmatprep.subr.bf16.mxu0 0
    %1027 = vmatpush1.bf16.msra.mxu0 0
    %1028 = vmatprep.subr.bf16.mxu0 0
    %1029 = vmatpush1.bf16.msra.mxu0 0
    %1030 = vmatprep.subr.bf16.mxu0 0
    %1031 = vmatpush1.bf16.msra.mxu0 0
    %1032 = vmatprep.subr.bf16.mxu0 0
    %1033 = vmatpush1.bf16.msra.mxu0 0
    %1034 = vmatprep.subr.bf16.mxu0 0
    %1035 = vmatpush1.bf16.msra.mxu0 0
    %1036 = vmatprep.subr.bf16.mxu0 0
    %1037 = vmatpush1.bf16.msra.mxu0 0
    %1038 = vmatprep.subr.bf16.mxu0 0
    %1039 = vmatpush1.bf16.msra.mxu0 0
    %1040 = vmatprep.subr.bf16.mxu0 0
    %1041 = vmatpush1.bf16.msra.mxu0 0
    %1042 = vmatprep.subr.bf16.mxu0 0
    %1043 = vmatpush1.bf16.msra.mxu0 0
    %1044 = vmatprep.mubr.bf16.mxu0 0
    %1045 = vmatmul.mubr.bf16.gmra.mrb[0].mxu0 %v1007
    %v1046 = vpop.f32.mrb[0].mxu0
    %v1047 = vadd.f32 0.0, %v1046
    %v1048 = vpop.f32.mrb[0].mxu0
    %v1049 = vpop.f32.mrb[0].mxu0
    %v1050 = vpop.f32.mrb[0].mxu0
    %1051 = vdwg.mxu0
    %v1053 = vsel %vm664, %v1003, 0
    %1055 = vmatprep.subr.bf16.mxu0 0
    %1056 = vmatpush1.bf16.msra.mxu0 %v1053
    %1057 = vmatprep.subr.bf16.mxu0 0
    %1058 = vmatpush1.bf16.msra.mxu0 0
    %1059 = vmatprep.subr.bf16.mxu0 0
    %1060 = vmatpush1.bf16.msra.mxu0 0
    %1061 = vmatprep.subr.bf16.mxu0 0
    %1062 = vmatpush1.bf16.msra.mxu0 0
    %1063 = vmatprep.subr.bf16.mxu0 0
    %1064 = vmatpush1.bf16.msra.mxu0 0
    %1065 = vmatprep.subr.bf16.mxu0 0
    %1066 = vmatpush1.bf16.msra.mxu0 0
    %1067 = vmatprep.subr.bf16.mxu0 0
    %1068 = vmatpush1.bf16.msra.mxu0 0
    %1069 = vmatprep.subr.bf16.mxu0 0
    %1070 = vmatpush1.bf16.msra.mxu0 0
    %1071 = vmatprep.subr.bf16.mxu0 0
    %1072 = vmatpush1.bf16.msra.mxu0 0
    %1073 = vmatprep.subr.bf16.mxu0 0
    %1074 = vmatpush1.bf16.msra.mxu0 0
    %1075 = vmatprep.subr.bf16.mxu0 0
    %1076 = vmatpush1.bf16.msra.mxu0 0
    %1077 = vmatprep.subr.bf16.mxu0 0
    %1078 = vmatpush1.bf16.msra.mxu0 0
    %1079 = vmatprep.subr.bf16.mxu0 0
    %1080 = vmatpush1.bf16.msra.mxu0 0
    %1081 = vmatprep.subr.bf16.mxu0 0
    %1082 = vmatpush1.bf16.msra.mxu0 0
    %1083 = vmatprep.subr.bf16.mxu0 0
    %1084 = vmatpush1.bf16.msra.mxu0 0
    %1085 = vmatprep.subr.bf16.mxu0 0
    %1086 = vmatpush1.bf16.msra.mxu0 0
    %1087 = vmatprep.mubr.bf16.mxu0 0
    %1088 = vmatmul.mubr.bf16.gmra.mrb[0].mxu0 %v709
    %v1089 = vpop.f32.mrb[0].mxu0
    %v1090 = vadd.f32 %v1047, %v1089
    %v1091 = vpop.f32.mrb[0].mxu0
    %v1092 = vpop.f32.mrb[0].mxu0
    %v1093 = vpop.f32.mrb[0].mxu0
    %1094 = vdwg.mxu0
    %v1095 = vld [vmem:[#allocation25] sm:$0x1]
    %v1097 = vlaneseq
    %v1098 = vshrl.u32 %v1097, 7
    %v1099 = vsub.s32 0, %v1098
    %v1100 = vrot.slane %v1095, %v1099
    %v1102 = vadd.f32 %v1090, %v1100
    %v1103 = vmax.f32 %v1102, 0.0
    %v1104 = vpack.c.bf16 %v1103, %v1103
    %v1105 = vld [vmem:[%s18] sm:$0xf]
    %v1106 = vld [vmem:[%s18 + $0x4] sm:$0xf]
    %v1107 = vld [vmem:[%s18 + $0x8] sm:$0xf]
    %v1108 = vld [vmem:[%s18 + $0xc] sm:$0xf]
    %v1109 = vld [vmem:[%s18 + $0x10] sm:$0xf]
    %v1110 = vld [vmem:[%s18 + $0x14] sm:$0xf]
    %v1111 = vld [vmem:[%s18 + $0x18] sm:$0xf]
    %v1112 = vld [vmem:[%s18 + $0x1c] sm:$0xf]
    %v1113 = vld [vmem:[%s18 + $0x20] sm:$0xf]
    %v1114 = vld [vmem:[%s18 + $0x24] sm:$0xf]
    %v1115 = vld [vmem:[%s18 + $0x28] sm:$0xf]
    %v1116 = vld [vmem:[%s18 + $0x2c] sm:$0xf]
    %v1117 = vld [vmem:[%s18 + $0x30] sm:$0xf]
    %v1118 = vld [vmem:[%s18 + $0x34] sm:$0xf]
    %v1119 = vld [vmem:[%s18 + $0x38] sm:$0xf]
    %v1120 = vld [vmem:[%s18 + $0x3c] sm:$0xf]
    %v1121 = vld [vmem:[#allocation27] sm:$0x1]
    %v1123 = vlaneseq
    %v1124 = vshrl.u32 %v1123, 7
    %v1125 = vsub.s32 0, %v1124
    %v1126 = vrot.slane %v1121, %v1125
    %v1144 = vunpack.c.l.b16 %v1105
    %v1145 = vunpack.c.l.b16 %v1106
    %v1146 = vunpack.c.l.b16 %v1107
    %v1147 = vunpack.c.l.b16 %v1108
    %v1148 = vunpack.c.l.b16 %v1109
    %v1149 = vunpack.c.l.b16 %v1110
    %v1150 = vunpack.c.l.b16 %v1111
    %v1151 = vunpack.c.l.b16 %v1112
    %v1152 = vunpack.c.l.b16 %v1113
    %v1153 = vunpack.c.l.b16 %v1114
    %v1154 = vunpack.c.l.b16 %v1115
    %v1155 = vunpack.c.l.b16 %v1116
    %v1156 = vunpack.c.l.b16 %v1117
    %v1157 = vunpack.c.l.b16 %v1118
    %v1158 = vunpack.c.l.b16 %v1119
    %v1159 = vunpack.c.l.b16 %v1120
    %v1160 = vpack.c.b16 %v1145, %v1144
    %v1161 = vpack.c.b16 %v1147, %v1146
    %v1162 = vpack.c.b16 %v1149, %v1148
    %v1163 = vpack.c.b16 %v1151, %v1150
    %v1164 = vpack.c.b16 %v1153, %v1152
    %v1165 = vpack.c.b16 %v1155, %v1154
    %v1166 = vpack.c.b16 %v1157, %v1156
    %v1167 = vpack.c.b16 %v1159, %v1158
    %1176 = vmatprep.subr.bf16.mxu0 0
    %1177 = vmatpush1.bf16.msra.mxu0 %v1160
    %1178 = vmatprep.subr.bf16.mxu0 0
    %1179 = vmatpush1.bf16.msra.mxu0 %v1161
    %1180 = vmatprep.subr.bf16.mxu0 0
    %1181 = vmatpush1.bf16.msra.mxu0 %v1162
    %1182 = vmatprep.subr.bf16.mxu0 0
    %1183 = vmatpush1.bf16.msra.mxu0 %v1163
    %1184 = vmatprep.subr.bf16.mxu0 0
    %1185 = vmatpush1.bf16.msra.mxu0 %v1164
    %1186 = vmatprep.subr.bf16.mxu0 0
    %1187 = vmatpush1.bf16.msra.mxu0 %v1165
    %1188 = vmatprep.subr.bf16.mxu0 0
    %1189 = vmatpush1.bf16.msra.mxu0 %v1166
    %1190 = vmatprep.subr.bf16.mxu0 0
    %1191 = vmatpush1.bf16.msra.mxu0 %v1167
    %1192 = vmatprep.subr.bf16.mxu0 0
    %1193 = vmatpush1.bf16.msra.mxu0 0
    %1194 = vmatprep.subr.bf16.mxu0 0
    %1195 = vmatpush1.bf16.msra.mxu0 0
    %1196 = vmatprep.subr.bf16.mxu0 0
    %1197 = vmatpush1.bf16.msra.mxu0 0
    %1198 = vmatprep.subr.bf16.mxu0 0
    %1199 = vmatpush1.bf16.msra.mxu0 0
    %1200 = vmatprep.subr.bf16.mxu0 0
    %1201 = vmatpush1.bf16.msra.mxu0 0
    %1202 = vmatprep.subr.bf16.mxu0 0
    %1203 = vmatpush1.bf16.msra.mxu0 0
    %1204 = vmatprep.subr.bf16.mxu0 0
    %1205 = vmatpush1.bf16.msra.mxu0 0
    %1206 = vmatprep.subr.bf16.mxu0 0
    %1207 = vmatpush1.bf16.msra.mxu0 0
    %1208 = vmatprep.mubr.bf16.mxu0 0
    %1209 = vmatmul.mubr.bf16.gmra.mrb[0].mxu0 %v1104
    %v1210 = vpop.f32.mrb[0].mxu0
    %v1211 = vadd.f32 %v1126, %v1210
    %v1212 = vpop.f32.mrb[0].mxu0
    %v1213 = vpop.f32.mrb[0].mxu0
    %v1214 = vpop.f32.mrb[0].mxu0
    %1215 = vdwg.mxu0
    %v1216 = vmax.f32 %v1211, 0.0
    %v1217 = vpack.c.bf16 %v1216, %v1216
    %v1218 = vld [vmem:[#allocation28] sm:$0xf]
    %v1219 = vld [vmem:[#allocation28 + $0x4] sm:$0xf]
    %v1220 = vld [vmem:[#allocation28 + $0x8] sm:$0xf]
    %v1221 = vld [vmem:[#allocation28 + $0xc] sm:$0xf]
    %v1222 = vld [vmem:[#allocation28 + $0x10] sm:$0xf]
    %v1223 = vld [vmem:[#allocation28 + $0x14] sm:$0xf]
    %v1224 = vld [vmem:[#allocation28 + $0x18] sm:$0xf]
    %v1225 = vld [vmem:[#allocation28 + $0x1c] sm:$0xf]
    %v1226 = vld [vmem:[#allocation30] sm:$0x1]
    %v1228 = vlaneseq
    %v1229 = vshrl.u32 %v1228, 7
    %v1230 = vsub.s32 0, %v1229
    %v1231 = vrot.slane %v1226, %v1230
    %v1241 = vunpack.c.l.b16 %v1218
    %v1242 = vunpack.c.l.b16 %v1219
    %v1243 = vunpack.c.l.b16 %v1220
    %v1244 = vunpack.c.l.b16 %v1221
    %v1245 = vunpack.c.l.b16 %v1222
    %v1246 = vunpack.c.l.b16 %v1223
    %v1247 = vunpack.c.l.b16 %v1224
    %v1248 = vunpack.c.l.b16 %v1225
    %v1249 = vpack.c.b16 %v1242, %v1241
    %v1250 = vpack.c.b16 %v1244, %v1243
    %v1251 = vpack.c.b16 %v1246, %v1245
    %v1252 = vpack.c.b16 %v1248, %v1247
    %v1258 = vsel %vm364, %v1217, 0
    %1260 = vmatprep.subr.bf16.mxu0 0
    %1261 = vmatpush1.bf16.msra.mxu0 %v1249
    %1262 = vmatprep.subr.bf16.mxu0 0
    %1263 = vmatpush1.bf16.msra.mxu0 %v1250
    %1264 = vmatprep.subr.bf16.mxu0 0
    %1265 = vmatpush1.bf16.msra.mxu0 %v1251
    %1266 = vmatprep.subr.bf16.mxu0 0
    %1267 = vmatpush1.bf16.msra.mxu0 %v1252
    %1268 = vmatprep.subr.bf16.mxu0 0
    %1269 = vmatpush1.bf16.msra.mxu0 0
    %1270 = vmatprep.subr.bf16.mxu0 0
    %1271 = vmatpush1.bf16.msra.mxu0 0
    %1272 = vmatprep.subr.bf16.mxu0 0
    %1273 = vmatpush1.bf16.msra.mxu0 0
    %1274 = vmatprep.subr.bf16.mxu0 0
    %1275 = vmatpush1.bf16.msra.mxu0 0
    %1276 = vmatprep.subr.bf16.mxu0 0
    %1277 = vmatpush1.bf16.msra.mxu0 0
    %1278 = vmatprep.subr.bf16.mxu0 0
    %1279 = vmatpush1.bf16.msra.mxu0 0
    %1280 = vmatprep.subr.bf16.mxu0 0
    %1281 = vmatpush1.bf16.msra.mxu0 0
    %1282 = vmatprep.subr.bf16.mxu0 0
    %1283 = vmatpush1.bf16.msra.mxu0 0
    %1284 = vmatprep.subr.bf16.mxu0 0
    %1285 = vmatpush1.bf16.msra.mxu0 0
    %1286 = vmatprep.subr.bf16.mxu0 0
    %1287 = vmatpush1.bf16.msra.mxu0 0
    %1288 = vmatprep.subr.bf16.mxu0 0
    %1289 = vmatpush1.bf16.msra.mxu0 0
    %1290 = vmatprep.subr.bf16.mxu0 0
    %1291 = vmatpush1.bf16.msra.mxu0 0
    %1292 = vmatprep.mubr.bf16.mxu0 0
    %1293 = vmatmul.mubr.bf16.gmra.mrb[0].mxu0 %v1258
    %v1294 = vpop.f32.mrb[0].mxu0
    %v1295 = vadd.f32 %v1231, %v1294
    %v1296 = vpop.f32.mrb[0].mxu0
    %v1297 = vpop.f32.mrb[0].mxu0
    %v1298 = vpop.f32.mrb[0].mxu0
    %1299 = vdwg.mxu0
    %v1300 = vld [vmem:[#allocation31] sm:$0xf]
    %v1301 = vld [vmem:[%s23] sm:$0x1]
    %v1303 = vlaneseq
    %v1304 = vshrl.u32 %v1303, 7
    %v1305 = vsub.s32 0, %v1304
    %v1306 = vrot.slane %v1301, %v1305
    %v1309 = vsel %vm664, %v1300, 0
    %1311 = vmatprep.subr.bf16.mxu0 0
    %1312 = vmatpush1.bf16.msra.mxu0 %v1309
    %1313 = vmatprep.subr.bf16.mxu0 0
    %1314 = vmatpush1.bf16.msra.mxu0 0
    %1315 = vmatprep.subr.bf16.mxu0 0
    %1316 = vmatpush1.bf16.msra.mxu0 0
    %1317 = vmatprep.subr.bf16.mxu0 0
    %1318 = vmatpush1.bf16.msra.mxu0 0
    %1319 = vmatprep.subr.bf16.mxu0 0
    %1320 = vmatpush1.bf16.msra.mxu0 0
    %1321 = vmatprep.subr.bf16.mxu0 0
    %1322 = vmatpush1.bf16.msra.mxu0 0
    %1323 = vmatprep.subr.bf16.mxu0 0
    %1324 = vmatpush1.bf16.msra.mxu0 0
    %1325 = vmatprep.subr.bf16.mxu0 0
    %1326 = vmatpush1.bf16.msra.mxu0 0
    %1327 = vmatprep.subr.bf16.mxu0 0
    %1328 = vmatpush1.bf16.msra.mxu0 0
    %1329 = vmatprep.subr.bf16.mxu0 0
    %1330 = vmatpush1.bf16.msra.mxu0 0
    %1331 = vmatprep.subr.bf16.mxu0 0
    %1332 = vmatpush1.bf16.msra.mxu0 0
    %1333 = vmatprep.subr.bf16.mxu0 0
    %1334 = vmatpush1.bf16.msra.mxu0 0
    %1335 = vmatprep.subr.bf16.mxu0 0
    %1336 = vmatpush1.bf16.msra.mxu0 0
    %1337 = vmatprep.subr.bf16.mxu0 0
    %1338 = vmatpush1.bf16.msra.mxu0 0
    %1339 = vmatprep.subr.bf16.mxu0 0
    %1340 = vmatpush1.bf16.msra.mxu0 0
    %1341 = vmatprep.subr.bf16.mxu0 0
    %1342 = vmatpush1.bf16.msra.mxu0 0
    %1343 = vmatprep.mubr.bf16.mxu0 0
    %1344 = vmatmul.mubr.bf16.gmra.mrb[0].mxu0 %v1007
    %v1345 = vpop.f32.mrb[0].mxu0
    %v1346 = vadd.f32 %v1306, %v1345
    %v1347 = vpop.f32.mrb[0].mxu0
    %v1348 = vpop.f32.mrb[0].mxu0
    %v1349 = vpop.f32.mrb[0].mxu0
    %1350 = vdwg.mxu0
    %v1351 = vmax.f32 %v1346, 0.0
    %v1352 = vpack.c.bf16 %v1351, %v1351
    %v1353 = vld [vmem:[%s24] sm:$0xf]
    %v1354 = vld [vmem:[%s24 + $0x4] sm:$0xf]
    %v1355 = vld [vmem:[%s24 + $0x8] sm:$0xf]
    %v1356 = vld [vmem:[%s24 + $0xc] sm:$0xf]
    %v1357 = vld [vmem:[%s25] sm:$0x1]
    %v1359 = vlaneseq
    %v1360 = vshrl.u32 %v1359, 7
    %v1361 = vsub.s32 0, %v1360
    %v1362 = vrot.slane %v1357, %v1361
    %v1368 = vunpack.c.l.b16 %v1353
    %v1369 = vunpack.c.l.b16 %v1354
    %v1370 = vunpack.c.l.b16 %v1355
    %v1371 = vunpack.c.l.b16 %v1356
    %v1372 = vpack.c.b16 %v1369, %v1368
    %v1373 = vpack.c.b16 %v1371, %v1370
    %vm1376 = vcmask 261120
    %v1378 = vsel %vm1376, %v1352, 0
    %1380 = vmatprep.subr.bf16.mxu0 0
    %1381 = vmatpush1.bf16.msra.mxu0 %v1372
    %1382 = vmatprep.subr.bf16.mxu0 0
    %1383 = vmatpush1.bf16.msra.mxu0 %v1373
    %1384 = vmatprep.subr.bf16.mxu0 0
    %1385 = vmatpush1.bf16.msra.mxu0 0
    %1386 = vmatprep.subr.bf16.mxu0 0
    %1387 = vmatpush1.bf16.msra.mxu0 0
    %1388 = vmatprep.subr.bf16.mxu0 0
    %1389 = vmatpush1.bf16.msra.mxu0 0
    %1390 = vmatprep.subr.bf16.mxu0 0
    %1391 = vmatpush1.bf16.msra.mxu0 0
    %1392 = vmatprep.subr.bf16.mxu0 0
    %1393 = vmatpush1.bf16.msra.mxu0 0
    %1394 = vmatprep.subr.bf16.mxu0 0
    %1395 = vmatpush1.bf16.msra.mxu0 0
    %1396 = vmatprep.subr.bf16.mxu0 0
    %1397 = vmatpush1.bf16.msra.mxu0 0
    %1398 = vmatprep.subr.bf16.mxu0 0
    %1399 = vmatpush1.bf16.msra.mxu0 0
    %1400 = vmatprep.subr.bf16.mxu0 0
    %1401 = vmatpush1.bf16.msra.mxu0 0
    %1402 = vmatprep.subr.bf16.mxu0 0
    %1403 = vmatpush1.bf16.msra.mxu0 0
    %1404 = vmatprep.subr.bf16.mxu0 0
    %1405 = vmatpush1.bf16.msra.mxu0 0
    %1406 = vmatprep.subr.bf16.mxu0 0
    %1407 = vmatpush1.bf16.msra.mxu0 0
    %1408 = vmatprep.subr.bf16.mxu0 0
    %1409 = vmatpush1.bf16.msra.mxu0 0
    %1410 = vmatprep.subr.bf16.mxu0 0
    %1411 = vmatpush1.bf16.msra.mxu0 0
    %1412 = vmatprep.mubr.bf16.mxu0 0
    %1413 = vmatmul.mubr.bf16.gmra.mrb[0].mxu0 %v1378
    %v1414 = vpop.f32.mrb[0].mxu0
    %v1415 = vadd.f32 %v1362, %v1414
    %v1416 = vpop.f32.mrb[0].mxu0
    %v1417 = vpop.f32.mrb[0].mxu0
    %v1418 = vpop.f32.mrb[0].mxu0
    %1419 = vdwg.mxu0
    %v1420 = vxor.u32 %v1415, 2147483648
    %v1421 = vmul.f32 %v1420, 1.442695
    %v1422 = vpow.pop %v1421
    %v1423 = vadd.f32 %v1422, 1.0
    %v1424 = vrcp.pop %v1423
    %v1425 = vmul.f32 1.0, %v1424
    %v1426 = vmul.f32 %v1425, %v1295
    %v1427 = vadd.f32 %v648, %v1426
    %v1428 = vpack.c.bf16 %v1427, %v1427
    %v1430 = vsel %vm660, %v1428, 0
    %1432 = vmatprep.subr.bf16.mxu0 0
    %1433 = vmatpush1.bf16.msra.mxu0 %v712
    %1434 = vmatprep.subr.bf16.mxu0 0
    %1435 = vmatpush1.bf16.msra.mxu0 0
    %1436 = vmatprep.subr.bf16.mxu0 0
    %1437 = vmatpush1.bf16.msra.mxu0 0
    %1438 = vmatprep.subr.bf16.mxu0 0
    %1439 = vmatpush1.bf16.msra.mxu0 0
    %1440 = vmatprep.subr.bf16.mxu0 0
    %1441 = vmatpush1.bf16.msra.mxu0 0
    %1442 = vmatprep.subr.bf16.mxu0 0
    %1443 = vmatpush1.bf16.msra.mxu0 0
    %1444 = vmatprep.subr.bf16.mxu0 0
    %1445 = vmatpush1.bf16.msra.mxu0 0
    %1446 = vmatprep.subr.bf16.mxu0 0
    %1447 = vmatpush1.bf16.msra.mxu0 0
    %1448 = vmatprep.subr.bf16.mxu0 0
    %1449 = vmatpush1.bf16.msra.mxu0 0
    %1450 = vmatprep.subr.bf16.mxu0 0
    %1451 = vmatpush1.bf16.msra.mxu0 0
    %1452 = vmatprep.subr.bf16.mxu0 0
    %1453 = vmatpush1.bf16.msra.mxu0 0
    %1454 = vmatprep.subr.bf16.mxu0 0
    %1455 = vmatpush1.bf16.msra.mxu0 0
    %1456 = vmatprep.subr.bf16.mxu0 0
    %1457 = vmatpush1.bf16.msra.mxu0 0
    %1458 = vmatprep.subr.bf16.mxu0 0
    %1459 = vmatpush1.bf16.msra.mxu0 0
    %1460 = vmatprep.subr.bf16.mxu0 0
    %1461 = vmatpush1.bf16.msra.mxu0 0
    %1462 = vmatprep.subr.bf16.mxu0 0
    %1463 = vmatpush1.bf16.msra.mxu0 0
    %1464 = vmatprep.mubr.bf16.mxu0 0
    %1465 = vmatmul.mubr.bf16.gmra.mrb[0].mxu0 %v1430
    %v1466 = vpop.f32.mrb[0].mxu0
    %v1467 = vadd.f32 %v703, %v1466
    %v1468 = vpop.f32.mrb[0].mxu0
    %v1469 = vpop.f32.mrb[0].mxu0
    %v1470 = vpop.f32.mrb[0].mxu0
    %1471 = vdwg.mxu0
    %v1472 = vadd.f32 %v1467, %v757
    %v1473 = vsel %vm364, %v1472, 0.0
    %1474 = vadd.xlane.f32.xlu0 %v1473
    %v1475 = vpop.xlane.xlu0 %1474
    %v1476 = vmul.f32 %v1475, %v546
    %v1477 = vmul.f32 %v1472, %v1472
    %v1478 = vsel %vm364, %v1477, 0.0
    %1479 = vadd.xlane.f32.xlu0 %v1478
    %v1480 = vpop.xlane.xlu0 %1479
    %v1481 = vmul.f32 %v1480, %v546
    %v1482 = vsub.f32 %v1472, %v1476
    %v1483 = vmul.f32 %v1476, %v1476
    %v1484 = vsub.f32 %v1481, %v1483
    %v1485 = vadd.f32 %v1484, 1e-05
    %v1486 = vrsqrt.pop %v1485
    %v1487 = vmul.f32 %v1482, %v1486
    %v1488 = vmul.f32 %v1487, %v777
    %v1489 = vadd.f32 %v1488, %v782
    %v1490 = vmax.f32 %v1489, 0.0
    %v1491 = vpack.c.bf16 %v1490, %v1490
    %v1493 = vsel %vm364, %v1491, 0
    %1495 = vmatprep.subr.bf16.mxu0 0
    %1496 = vmatpush1.bf16.msra.mxu0 %v815
    %1497 = vmatprep.subr.bf16.mxu0 0
    %1498 = vmatpush1.bf16.msra.mxu0 %v816
    %1499 = vmatprep.subr.bf16.mxu0 0
    %1500 = vmatpush1.bf16.msra.mxu0 %v817
    %1501 = vmatprep.subr.bf16.mxu0 0
    %1502 = vmatpush1.bf16.msra.mxu0 %v818
    %1503 = vmatprep.subr.bf16.mxu0 0
    %1504 = vmatpush1.bf16.msra.mxu0 0
    %1505 = vmatprep.subr.bf16.mxu0 0
    %1506 = vmatpush1.bf16.msra.mxu0 0
    %1507 = vmatprep.subr.bf16.mxu0 0
    %1508 = vmatpush1.bf16.msra.mxu0 0
    %1509 = vmatprep.subr.bf16.mxu0 0
    %1510 = vmatpush1.bf16.msra.mxu0 0
    %1511 = vmatprep.subr.bf16.mxu0 0
    %1512 = vmatpush1.bf16.msra.mxu0 0
    %1513 = vmatprep.subr.bf16.mxu0 0
    %1514 = vmatpush1.bf16.msra.mxu0 0
    %1515 = vmatprep.subr.bf16.mxu0 0
    %1516 = vmatpush1.bf16.msra.mxu0 0
    %1517 = vmatprep.subr.bf16.mxu0 0
    %1518 = vmatpush1.bf16.msra.mxu0 0
    %1519 = vmatprep.subr.bf16.mxu0 0
    %1520 = vmatpush1.bf16.msra.mxu0 0
    %1521 = vmatprep.subr.bf16.mxu0 0
    %1522 = vmatpush1.bf16.msra.mxu0 0
    %1523 = vmatprep.subr.bf16.mxu0 0
    %1524 = vmatpush1.bf16.msra.mxu0 0
    %1525 = vmatprep.subr.bf16.mxu0 0
    %1526 = vmatpush1.bf16.msra.mxu0 0
    %1527 = vmatprep.mubr.bf16.mxu0 0
    %1528 = vmatmul.mubr.bf16.gmra.mrb[0].mxu0 %v1493
    %v1529 = vpop.f32.mrb[0].mxu0
    %v1530 = vadd.f32 %v798, %v1529
    %v1531 = vpop.f32.mrb[0].mxu0
    %v1532 = vpop.f32.mrb[0].mxu0
    %v1533 = vpop.f32.mrb[0].mxu0
    %1534 = vdwg.mxu0
    %1535 = vadd.xlane.f32.xlu0 %v1530
    %v1536 = vpop.xlane.xlu0 %1535
    %v1537 = vmul.f32 %v1536, %v410
    %v1538 = vmul.f32 %v1530, %v1530
    %1539 = vadd.xlane.f32.xlu0 %v1538
    %v1540 = vpop.xlane.xlu0 %1539
    %v1541 = vmul.f32 %v1540, %v410
    %v1542 = vsub.f32 %v1530, %v1537
    %v1543 = vmul.f32 %v1537, %v1537
    %v1544 = vsub.f32 %v1541, %v1543
    %v1545 = vadd.f32 %v1544, 1e-05
    %v1546 = vrsqrt.pop %v1545
    %v1547 = vmul.f32 %v1542, %v1546
    %v1548 = vmul.f32 %v1547, %v882
    %v1549 = vadd.f32 %v1548, %v887
    %v1550 = vmax.f32 %v1549, 0.0
    %v1551 = vpack.c.bf16 %v1550, %v1550
    %1552 = vmatprep.subr.bf16.mxu0 0
    %1553 = vmatpush1.bf16.msra.mxu0 %v946
    %1554 = vmatprep.subr.bf16.mxu0 0
    %1555 = vmatpush1.bf16.msra.mxu0 %v947
    %1556 = vmatprep.subr.bf16.mxu0 0
    %1557 = vmatpush1.bf16.msra.mxu0 %v948
    %1558 = vmatprep.subr.bf16.mxu0 0
    %1559 = vmatpush1.bf16.msra.mxu0 %v949
    %1560 = vmatprep.subr.bf16.mxu0 0
    %1561 = vmatpush1.bf16.msra.mxu0 %v950
    %1562 = vmatprep.subr.bf16.mxu0 0
    %1563 = vmatpush1.bf16.msra.mxu0 %v951
    %1564 = vmatprep.subr.bf16.mxu0 0
    %1565 = vmatpush1.bf16.msra.mxu0 %v952
    %1566 = vmatprep.subr.bf16.mxu0 0
    %1567 = vmatpush1.bf16.msra.mxu0 %v953
    %1568 = vmatprep.subr.bf16.mxu0 0
    %1569 = vmatpush1.bf16.msra.mxu0 0
    %1570 = vmatprep.subr.bf16.mxu0 0
    %1571 = vmatpush1.bf16.msra.mxu0 0
    %1572 = vmatprep.subr.bf16.mxu0 0
    %1573 = vmatpush1.bf16.msra.mxu0 0
    %1574 = vmatprep.subr.bf16.mxu0 0
    %1575 = vmatpush1.bf16.msra.mxu0 0
    %1576 = vmatprep.subr.bf16.mxu0 0
    %1577 = vmatpush1.bf16.msra.mxu0 0
    %1578 = vmatprep.subr.bf16.mxu0 0
    %1579 = vmatpush1.bf16.msra.mxu0 0
    %1580 = vmatprep.subr.bf16.mxu0 0
    %1581 = vmatpush1.bf16.msra.mxu0 0
    %1582 = vmatprep.subr.bf16.mxu0 0
    %1583 = vmatpush1.bf16.msra.mxu0 0
    %1584 = vmatprep.mubr.bf16.mxu0 0
    %1585 = vmatmul.mubr.bf16.gmra.mrb[0].mxu0 %v1551
    %v1586 = vpop.f32.mrb[0].mxu0
    %v1587 = vadd.f32 %v912, %v1586
    %v1588 = vpop.f32.mrb[0].mxu0
    %v1589 = vpop.f32.mrb[0].mxu0
    %v1590 = vpop.f32.mrb[0].mxu0
    %1591 = vdwg.mxu0
    %1593 = vrot.lane.b32.xlu0 %v1587, 64
    %v1594 = vpop.permute.xlu0 %1593
    %1597 = vrot.lane.b32.xlu0 %v1427, 32
    %v1598 = vpop.permute.xlu0 %1597
    %v1600 = vsel %vm364, %v997, %v1594
    %v1601 = vsel %vm1376, %v648, %v1598
    %vm1602 = vcmask 326656
    %v1603 = vsel %vm1602, %v1601, 0.0
    %1604 = vst [vmem:[%s26] sm:$0xff] %v1600
    %1605 = vst [vmem:[%s26 + $0x8] sm:$0xff] %v1603
    // Predicated region
    $region186: #{causal_vae_forward.1} parent=1 // pred_check
      _
    $region187: #{causal_vae_forward.1} parent=1 // pred_check_branch
      %1607 = sbr.rel (0) target = $region189
    $region188: #{causal_vae_forward.1} parent=1 // pred_region
      _
    $region189: #{causal_vae_forward.1} parent=1 // pred_fallthru
      _
    // Predicated region
    $region190: #{causal_vae_forward.1} parent=1 // pred_check
      _
    $region191: #{causal_vae_forward.1} parent=1 // pred_check_branch
      %1609 = sbr.rel (0) target = $region193
    $region192: #{causal_vae_forward.1} parent=1 // pred_region
      _
    $region193: #{causal_vae_forward.1} parent=1 // pred_fallthru
      _
    %1610 = vsyncpa [#allocation3], 1
    %1611 = vsyncpa [#allocation5], 1
    %1612 = vsyncpa [#allocation8], 1
    %1613 = vsyncpa [#allocation11], 1
    %1614 = vsyncpa [#allocation14], 1
    %1615 = vsyncpa [#allocation17], 1
    %1616 = vsyncpa [#allocation20], 1
    %1617 = vsyncpa [#allocation23], 1
    %1618 = vsyncpa [#allocation26], 1
    %1619 = vsyncpa [#allocation29], 1
    %1620 = vsyncpa [#allocation32], 1

</llo_original>
